<compile_context>
chip_gen: v6e
topology: v6e:2x2x1
jax: 0.10.0
libtpu: 0.0.40
codegen_flags: <defaults>
</compile_context>

<pallas_src>
import functools

import jax
import jax.numpy as jnp
from jax.experimental import pallas as pl
from jax.experimental.pallas import tpu as pltpu

HIDDEN = 20
NUM_LAYERS = 4  # 1 input layer + (NUM_LAYERS - 1) hidden layers, all Tanh, + linear head
_VMEM_LIMIT_BYTES = 40 * 1024 * 1024  # < v7x 64 MiB/TC, well under v5e/v6e 128 MiB


def _pick_tile(n, tile_b):
    """Batch tile: multiple of 128, capped at tile_b, >= 4 grid steps when N allows."""
    cap = 128 * max(1, -(-n // (4 * 128)))              # 128 * ceil(n / 512)
    tile = min(128 * ((int(tile_b) + 127) // 128), cap)
    return max(128, tile)


def _resident_spec(arr):
    """Full-array block with a constant block index -> stays VMEM-resident."""
    nd = arr.ndim
    return pl.BlockSpec(arr.shape, lambda i, _nd=nd: (0,) * _nd)


def _mlp_kernel(x_ref, y_ref, t_ref, w1_ref, b1_ref, wh_ref, bh_ref,
                w5_ref, b5_ref, out_ref, *, compute_dtype):
    """One lane-dense batch tile of the PINN MLP; activations are [feature, batch]."""
    x = x_ref[...]                       # [1, TB]
    y = y_ref[...]
    t = t_ref[...]

    # Linear(3, H): only 3 inputs -> 3 broadcast multiply-adds on the VPU.
    w1 = w1_ref[...]                     # [H, 3]
    h = jnp.tanh(w1[:, 0:1] * x + w1[:, 1:2] * y + w1[:, 2:3] * t + b1_ref[...])

    # Hidden Linear(H, H) + Tanh; MXU dots in compute_dtype (bf16 or f32),
    # f32 accumulation, bias/tanh in f32.  h is [H, TB], batch on the lanes.
    for i in range(wh_ref.shape[0]):
        z = jnp.dot(wh_ref[i].astype(compute_dtype), h.astype(compute_dtype),
                    preferred_element_type=jnp.float32) + bh_ref[i]
        h = jnp.tanh(z)

    # Output head Linear(H, 1); result stays lane-dense [1, TB] -> unmasked stores.
    u = jnp.dot(w5_ref[...].astype(compute_dtype), h.astype(compute_dtype),
                preferred_element_type=jnp.float32) + b5_ref[...]
    out_ref[...] = u.astype(out_ref.dtype)


def _mlp_jvp_kernel(x_ref, y_ref, t_ref, w1_ref, b1_ref, wh_ref, bh_ref,
                    w5_ref, b5_ref, u_ref, ux_ref, uy_ref, ut_ref, *, compute_dtype):
    """Fused forward + forward-mode derivatives w.r.t. (x, y, t) for the PDE residual."""
    x = x_ref[...]
    y = y_ref[...]
    t = t_ref[...]

    w1 = w1_ref[...]                     # [H, 3]
    h = jnp.tanh(w1[:, 0:1] * x + w1[:, 1:2] * y + w1[:, 2:3] * t + b1_ref[...])
    d = 1.0 - h * h                      # tanh'(z)
    gx = d * w1[:, 0:1]                  # d h / d x, [H, TB]
    gy = d * w1[:, 1:2]
    gt = d * w1[:, 2:3]

    for i in range(wh_ref.shape[0]):
        wc = wh_ref[i].astype(compute_dtype)
        z = jnp.dot(wc, h.astype(compute_dtype),
                    preferred_element_type=jnp.float32) + bh_ref[i]
        h = jnp.tanh(z)
        d = 1.0 - h * h
        gx = d * jnp.dot(wc, gx.astype(compute_dtype), preferred_element_type=jnp.float32)
        gy = d * jnp.dot(wc, gy.astype(compute_dtype), preferred_element_type=jnp.float32)
        gt = d * jnp.dot(wc, gt.astype(compute_dtype), preferred_element_type=jnp.float32)

    w5c = w5_ref[...].astype(compute_dtype)
    u_ref[...] = (jnp.dot(w5c, h.astype(compute_dtype),
                          preferred_element_type=jnp.float32) + b5_ref[...]).astype(u_ref.dtype)
    ux_ref[...] = jnp.dot(w5c, gx.astype(compute_dtype),
                          preferred_element_type=jnp.float32).astype(ux_ref.dtype)
    uy_ref[...] = jnp.dot(w5c, gy.astype(compute_dtype),
                          preferred_element_type=jnp.float32).astype(uy_ref.dtype)
    ut_ref[...] = jnp.dot(w5c, gt.astype(compute_dtype),
                          preferred_element_type=jnp.float32).astype(ut_ref.dtype)


def init_params(key, num_layers=NUM_LAYERS, hidden_size=HIDDEN):
    """PyTorch-style uniform(+/- 1/sqrt(fan_in)) init; weights [out, in], biases [out, 1]."""
    dims = [3] + [hidden_size] * num_layers + [1]
    params = []
    for i in range(len(dims) - 1):
        fan_in, fan_out = dims[i], dims[i + 1]
        key, kw, kb = jax.random.split(key, 3)
        bound = 1.0 / float(fan_in) ** 0.5
        w = jax.random.uniform(kw, (fan_out, fan_in), jnp.float32, -bound, bound)
        b = jax.random.uniform(kb, (fan_out, 1), jnp.float32, -bound, bound)
        params.append((w, b))
    return params


def _prepare(x, y, t, params, tile_b):
    """Common wrapper prep: lane-major rows, padded batch, stacked weights."""
    n = x.shape[0]
    xr = x.reshape(1, n).astype(jnp.float32)   # [N,1] -> [1,N]: contiguous reshape
    yr = y.reshape(1, n).astype(jnp.float32)
    tr = t.reshape(1, n).astype(jnp.float32)

    tile = _pick_tile(n, tile_b)
    n_pad = tile * ((n + tile - 1) // tile)
    if n_pad != n:
        pad = ((0, 0), (0, n_pad - n))
        xr = jnp.pad(xr, pad)
        yr = jnp.pad(yr, pad)
        tr = jnp.pad(tr, pad)

    (w1, b1) = params[0]
    (w5, b5) = params[-1]
    wh = jnp.stack([w for (w, _) in params[1:-1]])   # [nh, H, H]
    bh = jnp.stack([b for (_, b) in params[1:-1]])   # [nh, H, 1]
    return n, n_pad, tile, xr, yr, tr, w1, b1, wh, bh, w5, b5


@functools.partial(jax.jit, static_argnames=("tile_b", "use_bf16"))
def convection_forward(x, y, t, params, tile_b=16384, use_bf16=True):
    """Equivalent of ConvectionEquation2D.forward(x, y, t): returns u of shape [N, 1]."""
    n, n_pad, tile, xr, yr, tr, w1, b1, wh, bh, w5, b5 = _prepare(x, y, t, params, tile_b)
    hidden = w1.shape[0]
    nh = wh.shape[0]

    row_spec = pl.BlockSpec((1, tile), lambda i: (0, i))
    grid_spec = pltpu.PrefetchScalarGridSpec(
        num_scalar_prefetch=0,
        grid=(n_pad // tile,),
        in_specs=[row_spec, row_spec, row_spec,
                  _resident_spec(w1), _resident_spec(b1),
                  _resident_spec(wh), _resident_spec(bh),
                  _resident_spec(w5), _resident_spec(b5)],
        out_specs=pl.BlockSpec((1, tile), lambda i: (0, i)),
    )
    kernel = functools.partial(
        _mlp_kernel, compute_dtype=jnp.bfloat16 if use_bf16 else jnp.float32)

    u_row = pl.pallas_call(
        kernel,
        out_shape=jax.ShapeDtypeStruct((1, n_pad), jnp.float32),
        grid_spec=grid_spec,
        compiler_params=pltpu.CompilerParams(
            dimension_semantics=("parallel",),
            vmem_limit_bytes=_VMEM_LIMIT_BYTES),
        cost_estimate=pl.CostEstimate(
            flops=(2 * 3 * hidden + nh * 2 * hidden * hidden + 2 * hidden) * n_pad,
            transcendentals=(nh + 1) * hidden * n_pad,
            bytes_accessed=16 * n_pad),
    )(xr, yr, tr, w1, b1, wh, bh, w5, b5)

    return u_row[:, :n].reshape(n, 1)


@functools.partial(jax.jit, static_argnames=("tile_b", "use_bf16"))
def convection_forward_with_grads(x, y, t, params, tile_b=8192, use_bf16=True):
    """Fused u, du/dx, du/dy, du/dt (each [N, 1]) for pde_loss's residual."""
    n, n_pad, tile, xr, yr, tr, w1, b1, wh, bh, w5, b5 = _prepare(x, y, t, params, tile_b)
    hidden = w1.shape[0]
    nh = wh.shape[0]

    row_spec = pl.BlockSpec((1, tile), lambda i: (0, i))
    out_row = jax.ShapeDtypeStruct((1, n_pad), jnp.float32)
    grid_spec = pltpu.PrefetchScalarGridSpec(
        num_scalar_prefetch=0,
        grid=(n_pad // tile,),
        in_specs=[row_spec, row_spec, row_spec,
                  _resident_spec(w1), _resident_spec(b1),
                  _resident_spec(wh), _resident_spec(bh),
                  _resident_spec(w5), _resident_spec(b5)],
        out_specs=tuple(pl.BlockSpec((1, tile), lambda i: (0, i)) for _ in range(4)),
    )
    kernel = functools.partial(
        _mlp_jvp_kernel, compute_dtype=jnp.bfloat16 if use_bf16 else jnp.float32)

    u, ux, uy, ut = pl.pallas_call(
        kernel,
        out_shape=(out_row, out_row, out_row, out_row),
        grid_spec=grid_spec,
        compiler_params=pltpu.CompilerParams(
            dimension_semantics=("parallel",),
            vmem_limit_bytes=_VMEM_LIMIT_BYTES),
        cost_estimate=pl.CostEstimate(
            flops=4 * (2 * 3 * hidden + nh * 2 * hidden * hidden + 2 * hidden) * n_pad,
            transcendentals=(nh + 1) * hidden * n_pad,
            bytes_accessed=28 * n_pad),
    )(xr, yr, tr, w1, b1, wh, bh, w5, b5)

    fix = lambda a: a[:, :n].reshape(n, 1)
    return fix(u), fix(ux), fix(uy), fix(ut)


def convection_forward_ref(x, y, t, params):
    """Plain-JAX f32 reference of the same forward pass (for correctness checking)."""
    h = jnp.concatenate([x, y, t], axis=1).astype(jnp.float32)      # [N, 3]
    for i, (w, b) in enumerate(params):
        h = h @ w.T + b.T                                           # w: [out, in], b: [out, 1]
        if i < len(params) - 1:
            h = jnp.tanh(h)
    return h


# TODO(synk): pde_loss / initial_loss / boundary_loss are plain-JAX reductions over
# the fused-kernel outputs; gradients w.r.t. the parameters (training) need a
# jax.custom_vjp around these pallas_calls and are not implemented here.

if __name__ == "__main__":
    key = jax.random.PRNGKey(0)
    kp, kx, ky, kt = jax.random.split(key, 4)

    params = init_params(kp)

    N = 4000  # collocation points; not a tile multiple -> exercises padding path
    x = jax.random.uniform(kx, (N, 1), jnp.float32)
    y = jax.random.uniform(ky, (N, 1), jnp.float32)
    t = jax.random.uniform(kt, (N, 1), jnp.float32)

    u_ref = convection_forward_ref(x, y, t, params)

    # f32-matmul path: bit-faithful to the torch module's numerics.
    u_f32 = jax.block_until_ready(convection_forward(x, y, t, params, use_bf16=False))
    assert u_f32.shape == (N, 1)
    assert jnp.allclose(u_f32, u_ref, atol=1e-5, rtol=1e-5), "f32 forward mismatch"

    # bf16-matmul path (default, ~3x fewer MXU passes; f32 accumulation retained).
    u_bf16 = jax.block_until_ready(convection_forward(x, y, t, params, use_bf16=True))
    assert jnp.allclose(u_bf16, u_ref, atol=2e-2, rtol=2e-2), "bf16 forward mismatch"

    # Fused forward + derivatives vs jax.jvp of the pure-JAX reference.
    ref_u = lambda xx, yy, tt: convection_forward_ref(xx, yy, tt, params)
    ones, zeros = jnp.ones_like(x), jnp.zeros_like(x)
    _, dux_ref = jax.jvp(ref_u, (x, y, t), (ones, zeros, zeros))
    _, duy_ref = jax.jvp(ref_u, (x, y, t), (zeros, ones, zeros))
    _, dut_ref = jax.jvp(ref_u, (x, y, t), (zeros, zeros, ones))

    u2, ux, uy, ut = jax.block_until_ready(
        convection_forward_with_grads(x, y, t, params, use_bf16=False))
    for got, want in ((u2, u_ref), (ux, dux_ref), (uy, duy_ref), (ut, dut_ref)):
        assert got.shape == (N, 1)
        assert jnp.allclose(got, want, atol=1e-5, rtol=1e-5), "f32 fused JVP mismatch"

    u3, ux3, uy3, ut3 = jax.block_until_ready(
        convection_forward_with_grads(x, y, t, params, use_bf16=True))
    for got, want in ((u3, u_ref), (ux3, dux_ref), (uy3, duy_ref), (ut3, dut_ref)):
        assert jnp.allclose(got, want, atol=3e-2, rtol=3e-2), "bf16 fused JVP mismatch"

    print("KERNEL_OK")
</pallas_src>

<mosaic_0001>
module attributes {stable_mosaic.version = 11 : i64} {
  func.func @_mlp_kernel(%arg0: i32, %arg1: memref<1x1024xf32, #tpu.memory_space<vmem>>, %arg2: memref<1x1024xf32, #tpu.memory_space<vmem>>, %arg3: memref<1x1024xf32, #tpu.memory_space<vmem>>, %arg4: memref<20x3xf32, #tpu.memory_space<vmem>>, %arg5: memref<20x1xf32, #tpu.memory_space<vmem>>, %arg6: memref<3x20x20xf32, #tpu.memory_space<vmem>>, %arg7: memref<3x20x1xf32, #tpu.memory_space<vmem>>, %arg8: memref<1x20xf32, #tpu.memory_space<vmem>>, %arg9: memref<1x1xf32, #tpu.memory_space<vmem>>, %arg10: memref<1x1024xf32, #tpu.memory_space<vmem>>) attributes {dimension_semantics = [#tpu.dimension_semantics<parallel>], iteration_bounds = array<i64: 4>, scalar_prefetch = 0 : i64, scratch_operands = 0 : i64, tpu.core_type = #tpu.core_type<tc>, window_params = [{transform_indices = @transform_0, window_bounds = array<i64: 1, 1024>}, {transform_indices = @transform_1, window_bounds = array<i64: 1, 1024>}, {transform_indices = @transform_2, window_bounds = array<i64: 1, 1024>}, {pipeline_mode = #tpu.pipeline_mode<synchronous>, transform_indices = @transform_3, window_bounds = array<i64: 20, 3>}, {pipeline_mode = #tpu.pipeline_mode<synchronous>, transform_indices = @transform_4, window_bounds = array<i64: 20, 1>}, {pipeline_mode = #tpu.pipeline_mode<synchronous>, transform_indices = @transform_5, window_bounds = array<i64: 3, 20, 20>}, {pipeline_mode = #tpu.pipeline_mode<synchronous>, transform_indices = @transform_6, window_bounds = array<i64: 3, 20, 1>}, {pipeline_mode = #tpu.pipeline_mode<synchronous>, transform_indices = @transform_7, window_bounds = array<i64: 1, 20>}, {pipeline_mode = #tpu.pipeline_mode<synchronous>, transform_indices = @transform_8, window_bounds = array<i64: 1, 1>}, {transform_indices = @transform_9, window_bounds = array<i64: 1, 1024>}]} {
    %c0 = arith.constant 0 : index
    %c0_0 = arith.constant 0 : index
    %0 = vector.load %arg1[%c0, %c0_0] : memref<1x1024xf32, #tpu.memory_space<vmem>>, vector<1x1024xf32>
    %c0_1 = arith.constant 0 : index
    %c0_2 = arith.constant 0 : index
    %1 = vector.load %arg2[%c0_1, %c0_2] : memref<1x1024xf32, #tpu.memory_space<vmem>>, vector<1x1024xf32>
    %c0_3 = arith.constant 0 : index
    %c0_4 = arith.constant 0 : index
    %2 = vector.load %arg3[%c0_3, %c0_4] : memref<1x1024xf32, #tpu.memory_space<vmem>>, vector<1x1024xf32>
    %c0_5 = arith.constant 0 : index
    %c0_6 = arith.constant 0 : index
    %3 = vector.load %arg4[%c0_5, %c0_6] : memref<20x3xf32, #tpu.memory_space<vmem>>, vector<20x3xf32>
    %4 = vector.extract_strided_slice %3 {offsets = [0, 0], sizes = [20, 1], strides = [1, 1]} : vector<20x3xf32> to vector<20x1xf32>
    %5 = vector.broadcast %4 : vector<20x1xf32> to vector<20x1024xf32>
    %6 = vector.broadcast %0 : vector<1x1024xf32> to vector<20x1024xf32>
    %7 = arith.mulf %5, %6 : vector<20x1024xf32>
    %8 = vector.extract_strided_slice %3 {offsets = [0, 1], sizes = [20, 1], strides = [1, 1]} : vector<20x3xf32> to vector<20x1xf32>
    %9 = vector.broadcast %8 : vector<20x1xf32> to vector<20x1024xf32>
    %10 = vector.broadcast %1 : vector<1x1024xf32> to vector<20x1024xf32>
    %11 = arith.mulf %9, %10 : vector<20x1024xf32>
    %12 = arith.addf %7, %11 : vector<20x1024xf32>
    %13 = vector.extract_strided_slice %3 {offsets = [0, 2], sizes = [20, 1], strides = [1, 1]} : vector<20x3xf32> to vector<20x1xf32>
    %14 = vector.broadcast %13 : vector<20x1xf32> to vector<20x1024xf32>
    %15 = vector.broadcast %2 : vector<1x1024xf32> to vector<20x1024xf32>
    %16 = arith.mulf %14, %15 : vector<20x1024xf32>
    %17 = arith.addf %12, %16 : vector<20x1024xf32>
    %c0_7 = arith.constant 0 : index
    %c0_8 = arith.constant 0 : index
    %18 = vector.load %arg5[%c0_7, %c0_8] : memref<20x1xf32, #tpu.memory_space<vmem>>, vector<20x1xf32>
    %19 = vector.broadcast %18 : vector<20x1xf32> to vector<20x1024xf32>
    %20 = arith.addf %17, %19 : vector<20x1024xf32>
    %21 = math.tanh %20 : vector<20x1024xf32>
    %c0_9 = arith.constant 0 : index
    %c0_10 = arith.constant 0 : index
    %c0_11 = arith.constant 0 : index
    %22 = vector.load %arg6[%c0_9, %c0_10, %c0_11] : memref<3x20x20xf32, #tpu.memory_space<vmem>>, vector<1x20x20xf32>
    %23 = vector.shape_cast %22 : vector<1x20x20xf32> to vector<20x20xf32>
    %cst = arith.constant dense<0.000000e+00> : vector<20x1024xf32>
    %24 = tpu.matmul %23, %21, %cst {dimension_numbers = #tpu.dot_dimension_numbers<[1], [0], [0], [1], [0, 0, 1, 1], [], []>} : vector<20x20xf32>, vector<20x1024xf32>, vector<20x1024xf32> -> vector<20x1024xf32>
    %c0_12 = arith.constant 0 : index
    %c0_13 = arith.constant 0 : index
    %c0_14 = arith.constant 0 : index
    %25 = vector.load %arg7[%c0_12, %c0_13, %c0_14] : memref<3x20x1xf32, #tpu.memory_space<vmem>>, vector<1x20x1xf32>
    %26 = vector.shape_cast %25 : vector<1x20x1xf32> to vector<20x1xf32>
    %27 = vector.broadcast %26 : vector<20x1xf32> to vector<20x1024xf32>
    %28 = arith.addf %24, %27 : vector<20x1024xf32>
    %29 = math.tanh %28 : vector<20x1024xf32>
    %c1 = arith.constant 1 : index
    %c0_15 = arith.constant 0 : index
    %c0_16 = arith.constant 0 : index
    %30 = vector.load %arg6[%c1, %c0_15, %c0_16] : memref<3x20x20xf32, #tpu.memory_space<vmem>>, vector<1x20x20xf32>
    %31 = vector.shape_cast %30 : vector<1x20x20xf32> to vector<20x20xf32>
    %cst_17 = arith.constant dense<0.000000e+00> : vector<20x1024xf32>
    %32 = tpu.matmul %31, %29, %cst_17 {dimension_numbers = #tpu.dot_dimension_numbers<[1], [0], [0], [1], [0, 0, 1, 1], [], []>} : vector<20x20xf32>, vector<20x1024xf32>, vector<20x1024xf32> -> vector<20x1024xf32>
    %c1_18 = arith.constant 1 : index
    %c0_19 = arith.constant 0 : index
    %c0_20 = arith.constant 0 : index
    %33 = vector.load %arg7[%c1_18, %c0_19, %c0_20] : memref<3x20x1xf32, #tpu.memory_space<vmem>>, vector<1x20x1xf32>
    %34 = vector.shape_cast %33 : vector<1x20x1xf32> to vector<20x1xf32>
    %35 = vector.broadcast %34 : vector<20x1xf32> to vector<20x1024xf32>
    %36 = arith.addf %32, %35 : vector<20x1024xf32>
    %37 = math.tanh %36 : vector<20x1024xf32>
    %c2 = arith.constant 2 : index
    %c0_21 = arith.constant 0 : index
    %c0_22 = arith.constant 0 : index
    %38 = vector.load %arg6[%c2, %c0_21, %c0_22] : memref<3x20x20xf32, #tpu.memory_space<vmem>>, vector<1x20x20xf32>
    %39 = vector.shape_cast %38 : vector<1x20x20xf32> to vector<20x20xf32>
    %cst_23 = arith.constant dense<0.000000e+00> : vector<20x1024xf32>
    %40 = tpu.matmul %39, %37, %cst_23 {dimension_numbers = #tpu.dot_dimension_numbers<[1], [0], [0], [1], [0, 0, 1, 1], [], []>} : vector<20x20xf32>, vector<20x1024xf32>, vector<20x1024xf32> -> vector<20x1024xf32>
    %c2_24 = arith.constant 2 : index
    %c0_25 = arith.constant 0 : index
    %c0_26 = arith.constant 0 : index
    %41 = vector.load %arg7[%c2_24, %c0_25, %c0_26] : memref<3x20x1xf32, #tpu.memory_space<vmem>>, vector<1x20x1xf32>
    %42 = vector.shape_cast %41 : vector<1x20x1xf32> to vector<20x1xf32>
    %43 = vector.broadcast %42 : vector<20x1xf32> to vector<20x1024xf32>
    %44 = arith.addf %40, %43 : vector<20x1024xf32>
    %45 = math.tanh %44 : vector<20x1024xf32>
    %c0_27 = arith.constant 0 : index
    %c0_28 = arith.constant 0 : index
    %46 = vector.load %arg8[%c0_27, %c0_28] : memref<1x20xf32, #tpu.memory_space<vmem>>, vector<1x20xf32>
    %cst_29 = arith.constant dense<0.000000e+00> : vector<1x1024xf32>
    %47 = tpu.matmul %46, %45, %cst_29 {dimension_numbers = #tpu.dot_dimension_numbers<[1], [0], [0], [1], [0, 0, 1, 1], [], []>} : vector<1x20xf32>, vector<20x1024xf32>, vector<1x1024xf32> -> vector<1x1024xf32>
    %c0_30 = arith.constant 0 : index
    %c0_31 = arith.constant 0 : index
    %48 = vector.load %arg9[%c0_30, %c0_31] : memref<1x1xf32, #tpu.memory_space<vmem>>, vector<1x1xf32>
    %49 = vector.broadcast %48 : vector<1x1xf32> to vector<1x1024xf32>
    %50 = arith.addf %47, %49 : vector<1x1024xf32>
    %c0_32 = arith.constant 0 : index
    %c0_33 = arith.constant 0 : index
    %51 = vector.load %arg10[%c0_32, %c0_33] : memref<1x1024xf32, #tpu.memory_space<vmem>>, vector<1x1024xf32>
    tpu.vector_store %arg10[%c0_32, %c0_33], %50 {strides = array<i32>} : memref<1x1024xf32, #tpu.memory_space<vmem>>, vector<1x1024xf32>,
    return
  }
  func.func @transform_0(%arg0: i32) -> (i32, i32) {
    %c0_i32 = arith.constant 0 : i32
    %c0_i32_0 = arith.constant 0 : i32
    return %c0_i32, %arg0 : i32, i32
  }
  func.func @transform_1(%arg0: i32) -> (i32, i32) {
    %c0_i32 = arith.constant 0 : i32
    %c0_i32_0 = arith.constant 0 : i32
    return %c0_i32, %arg0 : i32, i32
  }
  func.func @transform_2(%arg0: i32) -> (i32, i32) {
    %c0_i32 = arith.constant 0 : i32
    %c0_i32_0 = arith.constant 0 : i32
    return %c0_i32, %arg0 : i32, i32
  }
  func.func @transform_3(%arg0: i32) -> (i32, i32) {
    %c0_i32 = arith.constant 0 : i32
    %c0_i32_0 = arith.constant 0 : i32
    %c0_i32_1 = arith.constant 0 : i32
    return %c0_i32, %c0_i32_0 : i32, i32
  }
  func.func @transform_4(%arg0: i32) -> (i32, i32) {
    %c0_i32 = arith.constant 0 : i32
    %c0_i32_0 = arith.constant 0 : i32
    %c0_i32_1 = arith.constant 0 : i32
    return %c0_i32, %c0_i32_0 : i32, i32
  }
  func.func @transform_5(%arg0: i32) -> (i32, i32, i32) {
    %c0_i32 = arith.constant 0 : i32
    %c0_i32_0 = arith.constant 0 : i32
    %c0_i32_1 = arith.constant 0 : i32
    %c0_i32_2 = arith.constant 0 : i32
    return %c0_i32, %c0_i32_0, %c0_i32_1 : i32, i32, i32
  }
  func.func @transform_6(%arg0: i32) -> (i32, i32, i32) {
    %c0_i32 = arith.constant 0 : i32
    %c0_i32_0 = arith.constant 0 : i32
    %c0_i32_1 = arith.constant 0 : i32
    %c0_i32_2 = arith.constant 0 : i32
    return %c0_i32, %c0_i32_0, %c0_i32_1 : i32, i32, i32
  }
  func.func @transform_7(%arg0: i32) -> (i32, i32) {
    %c0_i32 = arith.constant 0 : i32
    %c0_i32_0 = arith.constant 0 : i32
    %c0_i32_1 = arith.constant 0 : i32
    return %c0_i32, %c0_i32_0 : i32, i32
  }
  func.func @transform_8(%arg0: i32) -> (i32, i32) {
    %c0_i32 = arith.constant 0 : i32
    %c0_i32_0 = arith.constant 0 : i32
    %c0_i32_1 = arith.constant 0 : i32
    return %c0_i32, %c0_i32_0 : i32, i32
  }
  func.func @transform_9(%arg0: i32) -> (i32, i32) {
    %c0_i32 = arith.constant 0 : i32
    %c0_i32_0 = arith.constant 0 : i32
    return %c0_i32, %arg0 : i32, i32
  }
}

</mosaic_0001>

<llo_original>
// kernel: convection_forward.1
$region0: #{convection_forward.1}
  #allocation0 [shape = 'u32[]', space=smem, size = 0x4, offset = 0x4, fixed_abs, tag = 'smem constant byte address 0x4 - core index']
  #allocation1 [shape = 'u32[144,128]{1,0:T(1,128)}', space=vmem, size = 0x12000, scoped, tag = 'internal scratch']
  #allocation2 [shape = 'f32[1,1]{1,0:T(1,128)S(1)}', space=vmem, size = 0x200, scoped, tag = 'scoped memory for convection_forward.1']
  %s0 = inlined_call_operand.vmem [shape: f32[1,4096], index: 0, kind: input, shape index: {}]
  %s1 = inlined_call_operand.vmem [shape: f32[1,4096], index: 1, kind: input, shape index: {}]
  %s2 = inlined_call_operand.vmem [shape: f32[1,4096], index: 2, kind: input, shape index: {}]
  %s3 = inlined_call_operand.vmem [shape: f32[20,3], index: 3, kind: input, shape index: {}]
  %s4 = inlined_call_operand.vmem [shape: f32[20,1], index: 4, kind: input, shape index: {}]
  %s5 = inlined_call_operand.vmem [shape: f32[3,20,20], index: 5, kind: input, shape index: {}]
  %s6 = inlined_call_operand.vmem [shape: f32[3,20,1], index: 6, kind: input, shape index: {}]
  %s7 = inlined_call_operand.vmem [shape: f32[1,20], index: 7, kind: input, shape index: {}]
  %s8 = inlined_call_operand.<no memory space> [shape: f32[1,1], index: 8, kind: input, shape index: {}]
  %s9 = inlined_call_operand.vmem [shape: f32[1,4096], index: 9, kind: output, shape index: {}]
  %s10 = sld [smem:[#allocation0]]
  $region69: #{convection_forward.1} parent=0
    _
  %s12 = ssub.s32 1, %s10
  %s13 = scalar_select 0, %s12, %s10
  %v14 = vstv %s8
  %15 = vst [vmem:[#allocation2] sm:$0x1] %v14
  loop: start=0, step=1, limit=6
  $region2: #{convection_forward.1} parent=0 // loop_pre_header
    _
  $region3: #{convection_forward.1} parent=0 // loop_header
    %s17 = sphi 0, %s21
    %p18 = scmp.ge.s32.totalorder %s17, 6
    %s27 = sphi 0, %s29
    %s30 = sphi 0, %s27
    %s31 = sphi 0, %s30
    %s47 = sphi 0, %s31
    %s53 = sphi 0, %s55
    %s56 = sphi 0, %s53
    %s57 = sphi 0, %s56
    %s73 = sphi 0, %s57
    %s79 = sphi 0, %s81
    %s82 = sphi 0, %s79
    %s83 = sphi 0, %s82
    %s99 = sphi 0, %s83
    %s103 = sphi 0, %s103
    %s105 = sphi 0, %s103
    %s106 = sphi 0, %s105
    %s120 = sphi 0, %s106
    %s124 = sphi 0, %s124
    %s126 = sphi 0, %s124
    %s127 = sphi 0, %s126
    %s141 = sphi 0, %s127
    %s145 = sphi 0, %s145
    %s147 = sphi 0, %s145
    %s148 = sphi 0, %s147
    %s162 = sphi 0, %s148
    %s166 = sphi 0, %s166
    %s168 = sphi 0, %s166
    %s169 = sphi 0, %s168
    %s183 = sphi 0, %s169
    %s187 = sphi 0, %s187
    %s189 = sphi 0, %s187
    %s190 = sphi 0, %s189
    %s204 = sphi 0, %s190
    %s208 = sphi 0, %s208
    %s210 = sphi 0, %s208
    %s211 = sphi 0, %s210
    %s225 = sphi 0, %s211
    %s231 = sphi 0, %s233
    %s234 = sphi 0, %s231
    %s235 = sphi 0, %s234
    %s251 = sphi 0, %s235
  $region4: #{convection_forward.1} parent=0 // loop_header_branch
    %20 = sbr.rel (%p18) target = $region8
  $region5: #{convection_forward.1} parent=0 // loop_body
    %s22 = ssub.s32 %s17, 1
    %s23 = ssub.s32 %s17, 2
    %s24 = sadd.s32 %s17, 1
    %s25 = ssub.s32 %s17, %s24
    %p26 = scmp.eq.s32.totalorder %s25, 0
    %s28 = sadd.s32 %s27, 1
    %s29 = scalar_select %p26, %s27, %s28
    %p32 = pneg %p26
    %p33 = scmp.eq.s32.totalorder %s17, 3
    %p34 = por %p32, %p33
    %p35 = scmp.ne.s32.totalorder %s27, %s30
    %p36 = scmp.eq.s32.totalorder %s17, 0
    %p37 = por %p35, %p36
    %p38 = scmp.ne.s32.totalorder %s27, %s30
    %p39 = scmp.eq.s32.totalorder %s22, 3
    %p40 = por %p38, %p39
    %p41 = scmp.ne.s32.totalorder %s30, %s31
    %p42 = scmp.eq.s32.totalorder %s22, 0
    %p43 = por %p41, %p42
    %p44 = scmp.ne.s32.totalorder %s30, %s31
    %p45 = scmp.eq.s32.totalorder %s23, 3
    %p46 = por %p44, %p45
    %p48 = scmp.ne.s32.totalorder %s31, %s47
    %p49 = scmp.eq.s32.totalorder %s23, 0
    %p50 = por %p48, %p49
    %s51 = ssub.s32 %s17, %s24
    %p52 = scmp.eq.s32.totalorder %s51, 0
    %s54 = sadd.s32 %s53, 1
    %s55 = scalar_select %p52, %s53, %s54
    %p58 = pneg %p52
    %p59 = scmp.eq.s32.totalorder %s17, 3
    %p60 = por %p58, %p59
    %p61 = scmp.ne.s32.totalorder %s53, %s56
    %p62 = scmp.eq.s32.totalorder %s17, 0
    %p63 = por %p61, %p62
    %p64 = scmp.ne.s32.totalorder %s53, %s56
    %p65 = scmp.eq.s32.totalorder %s22, 3
    %p66 = por %p64, %p65
    %p67 = scmp.ne.s32.totalorder %s56, %s57
    %p68 = scmp.eq.s32.totalorder %s22, 0
    %p69 = por %p67, %p68
    %p70 = scmp.ne.s32.totalorder %s56, %s57
    %p71 = scmp.eq.s32.totalorder %s23, 3
    %p72 = por %p70, %p71
    %p74 = scmp.ne.s32.totalorder %s57, %s73
    %p75 = scmp.eq.s32.totalorder %s23, 0
    %p76 = por %p74, %p75
    %s77 = ssub.s32 %s17, %s24
    %p78 = scmp.eq.s32.totalorder %s77, 0
    %s80 = sadd.s32 %s79, 1
    %s81 = scalar_select %p78, %s79, %s80
    %p84 = pneg %p78
    %p85 = scmp.eq.s32.totalorder %s17, 3
    %p86 = por %p84, %p85
    %p87 = scmp.ne.s32.totalorder %s79, %s82
    %p88 = scmp.eq.s32.totalorder %s17, 0
    %p89 = por %p87, %p88
    %p90 = scmp.ne.s32.totalorder %s79, %s82
    %p91 = scmp.eq.s32.totalorder %s22, 3
    %p92 = por %p90, %p91
    %p93 = scmp.ne.s32.totalorder %s82, %s83
    %p94 = scmp.eq.s32.totalorder %s22, 0
    %p95 = por %p93, %p94
    %p96 = scmp.ne.s32.totalorder %s82, %s83
    %p97 = scmp.eq.s32.totalorder %s23, 3
    %p98 = por %p96, %p97
    %p100 = scmp.ne.s32.totalorder %s83, %s99
    %p101 = scmp.eq.s32.totalorder %s23, 0
    %p102 = por %p100, %p101
    %s104 = sadd.s32 %s103, 1
    %p107 = scmp.eq.s32.totalorder %s17, 3
    %p108 = scmp.ne.s32.totalorder %s103, %s105
    %p109 = scmp.eq.s32.totalorder %s17, 0
    %p110 = por %p108, %p109
    %p111 = scmp.ne.s32.totalorder %s103, %s105
    %p112 = scmp.eq.s32.totalorder %s22, 3
    %p113 = por %p111, %p112
    %p114 = scmp.ne.s32.totalorder %s105, %s106
    %p115 = scmp.eq.s32.totalorder %s22, 0
    %p116 = por %p114, %p115
    %p117 = scmp.ne.s32.totalorder %s105, %s106
    %p118 = scmp.eq.s32.totalorder %s23, 3
    %p119 = por %p117, %p118
    %p121 = scmp.ne.s32.totalorder %s106, %s120
    %p122 = scmp.eq.s32.totalorder %s23, 0
    %p123 = por %p121, %p122
    %s125 = sadd.s32 %s124, 1
    %p128 = scmp.eq.s32.totalorder %s17, 3
    %p129 = scmp.ne.s32.totalorder %s124, %s126
    %p130 = scmp.eq.s32.totalorder %s17, 0
    %p131 = por %p129, %p130
    %p132 = scmp.ne.s32.totalorder %s124, %s126
    %p133 = scmp.eq.s32.totalorder %s22, 3
    %p134 = por %p132, %p133
    %p135 = scmp.ne.s32.totalorder %s126, %s127
    %p136 = scmp.eq.s32.totalorder %s22, 0
    %p137 = por %p135, %p136
    %p138 = scmp.ne.s32.totalorder %s126, %s127
    %p139 = scmp.eq.s32.totalorder %s23, 3
    %p140 = por %p138, %p139
    %p142 = scmp.ne.s32.totalorder %s127, %s141
    %p143 = scmp.eq.s32.totalorder %s23, 0
    %p144 = por %p142, %p143
    %s146 = sadd.s32 %s145, 1
    %p149 = scmp.eq.s32.totalorder %s17, 3
    %p150 = scmp.ne.s32.totalorder %s145, %s147
    %p151 = scmp.eq.s32.totalorder %s17, 0
    %p152 = por %p150, %p151
    %p153 = scmp.ne.s32.totalorder %s145, %s147
    %p154 = scmp.eq.s32.totalorder %s22, 3
    %p155 = por %p153, %p154
    %p156 = scmp.ne.s32.totalorder %s147, %s148
    %p157 = scmp.eq.s32.totalorder %s22, 0
    %p158 = por %p156, %p157
    %p159 = scmp.ne.s32.totalorder %s147, %s148
    %p160 = scmp.eq.s32.totalorder %s23, 3
    %p161 = por %p159, %p160
    %p163 = scmp.ne.s32.totalorder %s148, %s162
    %p164 = scmp.eq.s32.totalorder %s23, 0
    %p165 = por %p163, %p164
    %s167 = sadd.s32 %s166, 1
    %p170 = scmp.eq.s32.totalorder %s17, 3
    %p171 = scmp.ne.s32.totalorder %s166, %s168
    %p172 = scmp.eq.s32.totalorder %s17, 0
    %p173 = por %p171, %p172
    %p174 = scmp.ne.s32.totalorder %s166, %s168
    %p175 = scmp.eq.s32.totalorder %s22, 3
    %p176 = por %p174, %p175
    %p177 = scmp.ne.s32.totalorder %s168, %s169
    %p178 = scmp.eq.s32.totalorder %s22, 0
    %p179 = por %p177, %p178
    %p180 = scmp.ne.s32.totalorder %s168, %s169
    %p181 = scmp.eq.s32.totalorder %s23, 3
    %p182 = por %p180, %p181
    %p184 = scmp.ne.s32.totalorder %s169, %s183
    %p185 = scmp.eq.s32.totalorder %s23, 0
    %p186 = por %p184, %p185
    %s188 = sadd.s32 %s187, 1
    %p191 = scmp.eq.s32.totalorder %s17, 3
    %p192 = scmp.ne.s32.totalorder %s187, %s189
    %p193 = scmp.eq.s32.totalorder %s17, 0
    %p194 = por %p192, %p193
    %p195 = scmp.ne.s32.totalorder %s187, %s189
    %p196 = scmp.eq.s32.totalorder %s22, 3
    %p197 = por %p195, %p196
    %p198 = scmp.ne.s32.totalorder %s189, %s190
    %p199 = scmp.eq.s32.totalorder %s22, 0
    %p200 = por %p198, %p199
    %p201 = scmp.ne.s32.totalorder %s189, %s190
    %p202 = scmp.eq.s32.totalorder %s23, 3
    %p203 = por %p201, %p202
    %p205 = scmp.ne.s32.totalorder %s190, %s204
    %p206 = scmp.eq.s32.totalorder %s23, 0
    %p207 = por %p205, %p206
    %s209 = sadd.s32 %s208, 1
    %p212 = scmp.eq.s32.totalorder %s17, 3
    %p213 = scmp.ne.s32.totalorder %s208, %s210
    %p214 = scmp.eq.s32.totalorder %s17, 0
    %p215 = por %p213, %p214
    %p216 = scmp.ne.s32.totalorder %s208, %s210
    %p217 = scmp.eq.s32.totalorder %s22, 3
    %p218 = por %p216, %p217
    %p219 = scmp.ne.s32.totalorder %s210, %s211
    %p220 = scmp.eq.s32.totalorder %s22, 0
    %p221 = por %p219, %p220
    %p222 = scmp.ne.s32.totalorder %s210, %s211
    %p223 = scmp.eq.s32.totalorder %s23, 3
    %p224 = por %p222, %p223
    %p226 = scmp.ne.s32.totalorder %s211, %s225
    %p227 = scmp.eq.s32.totalorder %s23, 0
    %p228 = por %p226, %p227
    %s229 = ssub.s32 %s17, %s24
    %p230 = scmp.eq.s32.totalorder %s229, 0
    %s232 = sadd.s32 %s231, 1
    %s233 = scalar_select %p230, %s231, %s232
    %p236 = pneg %p230
    %p237 = scmp.eq.s32.totalorder %s17, 3
    %p238 = por %p236, %p237
    %p239 = scmp.ne.s32.totalorder %s231, %s234
    %p240 = scmp.eq.s32.totalorder %s17, 0
    %p241 = por %p239, %p240
    %p242 = scmp.ne.s32.totalorder %s231, %s234
    %p243 = scmp.eq.s32.totalorder %s22, 3
    %p244 = por %p242, %p243
    %p245 = scmp.ne.s32.totalorder %s234, %s235
    %p246 = scmp.eq.s32.totalorder %s22, 0
    %p247 = por %p245, %p246
    %p248 = scmp.ne.s32.totalorder %s234, %s235
    %p249 = scmp.eq.s32.totalorder %s23, 3
    %p250 = por %p248, %p249
    %p252 = scmp.ne.s32.totalorder %s235, %s251
    %p253 = scmp.eq.s32.totalorder %s23, 0
    %p254 = por %p252, %p253
    %p255 = scmp.le.s32.totalorder 1, %s17
    %p256 = scmp.lt.s32.totalorder %s17, 5
    %p257 = pnand %p255, %p256
    %p258 = pneg %p257
    // Predicated region
    $region9: #{convection_forward.1} parent=5 // pred_check
      _
    $region10: #{convection_forward.1} parent=5 // pred_check_branch
      %260 = sbr.rel (%p257) target = $region12
    $region11: #{convection_forward.1} parent=5 // pred_region
      %s261 = ssub.s32 %s17, 1
      // Predicated region
      $region13: #{convection_forward.1} parent=11 // pred_check
        %p262 = pneg %p116
      $region14: #{convection_forward.1} parent=11 // pred_check_branch
        %264 = sbr.rel (%p262) target = $region16
      $region15: #{convection_forward.1} parent=11 // pred_region
        _
      $region16: #{convection_forward.1} parent=11 // pred_fallthru
        _
      // Predicated region
      $region17: #{convection_forward.1} parent=11 // pred_check
        %p265 = pneg %p137
      $region18: #{convection_forward.1} parent=11 // pred_check_branch
        %267 = sbr.rel (%p265) target = $region20
      $region19: #{convection_forward.1} parent=11 // pred_region
        _
      $region20: #{convection_forward.1} parent=11 // pred_fallthru
        _
      // Predicated region
      $region21: #{convection_forward.1} parent=11 // pred_check
        %p268 = pneg %p158
      $region22: #{convection_forward.1} parent=11 // pred_check_branch
        %270 = sbr.rel (%p268) target = $region24
      $region23: #{convection_forward.1} parent=11 // pred_region
        _
      $region24: #{convection_forward.1} parent=11 // pred_fallthru
        _
      // Predicated region
      $region25: #{convection_forward.1} parent=11 // pred_check
        %p271 = pneg %p179
      $region26: #{convection_forward.1} parent=11 // pred_check_branch
        %273 = sbr.rel (%p271) target = $region28
      $region27: #{convection_forward.1} parent=11 // pred_region
        _
      $region28: #{convection_forward.1} parent=11 // pred_fallthru
        _
      // Predicated region
      $region29: #{convection_forward.1} parent=11 // pred_check
        %p274 = pneg %p200
      $region30: #{convection_forward.1} parent=11 // pred_check_branch
        %276 = sbr.rel (%p274) target = $region32
      $region31: #{convection_forward.1} parent=11 // pred_region
        _
      $region32: #{convection_forward.1} parent=11 // pred_fallthru
        _
      // Predicated region
      $region33: #{convection_forward.1} parent=11 // pred_check
        %p277 = pneg %p221
      $region34: #{convection_forward.1} parent=11 // pred_check_branch
        %279 = sbr.rel (%p277) target = $region36
      $region35: #{convection_forward.1} parent=11 // pred_region
        _
      $region36: #{convection_forward.1} parent=11 // pred_fallthru
        _
    $region12: #{convection_forward.1} parent=5 // pred_fallthru
      _
    %p280 = scmp.lt.s32.totalorder %s17, 4
    // Predicated region
    $region37: #{convection_forward.1} parent=5 // pred_check
      %p281 = pneg %p280
    $region38: #{convection_forward.1} parent=5 // pred_check_branch
      %283 = sbr.rel (%p281) target = $region40
    $region39: #{convection_forward.1} parent=5 // pred_region
      // Predicated region
      $region41: #{convection_forward.1} parent=39 // pred_check
        %p284 = pneg %p37
      $region42: #{convection_forward.1} parent=39 // pred_check_branch
        %286 = sbr.rel (%p284) target = $region44
      $region43: #{convection_forward.1} parent=39 // pred_region
        %s287 = smul.u32 8, %s17
        %p288 = scmp.lt.s32.totalorder %s287, 31
        %s289 = scalar_select %p288, %s287, 31
        %s290 = scalar_lea.vmem %s0, %s289
        %s291 = smul.u32 8, %s17
      $region44: #{convection_forward.1} parent=39 // pred_fallthru
        _
      // Predicated region
      $region45: #{convection_forward.1} parent=39 // pred_check
        %p292 = pneg %p63
      $region46: #{convection_forward.1} parent=39 // pred_check_branch
        %294 = sbr.rel (%p292) target = $region48
      $region47: #{convection_forward.1} parent=39 // pred_region
        %s295 = smul.u32 8, %s17
        %p296 = scmp.lt.s32.totalorder %s295, 31
        %s297 = scalar_select %p296, %s295, 31
        %s298 = scalar_lea.vmem %s1, %s297
        %s299 = smul.u32 8, %s17
      $region48: #{convection_forward.1} parent=39 // pred_fallthru
        _
      // Predicated region
      $region49: #{convection_forward.1} parent=39 // pred_check
        %p300 = pneg %p89
      $region50: #{convection_forward.1} parent=39 // pred_check_branch
        %302 = sbr.rel (%p300) target = $region52
      $region51: #{convection_forward.1} parent=39 // pred_region
        %s303 = smul.u32 8, %s17
        %p304 = scmp.lt.s32.totalorder %s303, 31
        %s305 = scalar_select %p304, %s303, 31
        %s306 = scalar_lea.vmem %s2, %s305
        %s307 = smul.u32 8, %s17
      $region52: #{convection_forward.1} parent=39 // pred_fallthru
        _
    $region40: #{convection_forward.1} parent=5 // pred_fallthru
      _
    %p308 = scmp.le.s32.totalorder 1, %s17
    %p309 = scmp.lt.s32.totalorder %s17, 5
    %p310 = pnand %p308, %p309
    %p311 = pneg %p310
    // Predicated region
    $region53: #{convection_forward.1} parent=5 // pred_check
      _
    $region54: #{convection_forward.1} parent=5 // pred_check_branch
      %313 = sbr.rel (%p310) target = $region56
    $region55: #{convection_forward.1} parent=5 // pred_region
      %s314 = ssub.s32 %s17, 1
      %s315 = smul.u32 8, %s22
      %p316 = scmp.lt.s32.totalorder %s315, 31
      %s317 = scalar_select %p316, %s315, 31
      %s318 = scalar_lea.vmem %s0, %s317
      %p319 = pneg %p43
      %p320 = pneg %p40
      %s321 = smul.u32 8, %s22
      %p322 = scmp.lt.s32.totalorder %s321, 31
      %s323 = scalar_select %p322, %s321, 31
      %s324 = scalar_lea.vmem %s1, %s323
      %p325 = pneg %p69
      %p326 = pneg %p66
      %s327 = smul.u32 8, %s22
      %p328 = scmp.lt.s32.totalorder %s327, 31
      %s329 = scalar_select %p328, %s327, 31
      %s330 = scalar_lea.vmem %s2, %s329
      %p331 = pneg %p95
      %p332 = pneg %p92
      %p333 = pneg %p116
      %p334 = pneg %p113
      %p335 = pneg %p137
      %p336 = pneg %p134
      %p337 = pneg %p158
      %p338 = pneg %p155
      %p339 = pneg %p179
      %p340 = pneg %p176
      %p341 = pneg %p200
      %p342 = pneg %p197
      %p343 = pneg %p221
      %p344 = pneg %p218
      %p345 = pneg %p247
      %p346 = pneg %p244
      %s347 = smul.u32 8, %s22
      %p348 = scmp.lt.s32.totalorder %s347, 31
      %s349 = scalar_select %p348, %s347, 31
      %s350 = scalar_lea.vmem %s9, %s349
      %s351 = smul.u32 8, %s22
      %p352 = scmp.lt.s32.totalorder %s351, 31
      %s353 = scalar_select %p352, %s351, 31
      %s354 = scalar_lea.vmem %s0, %s353
      %s355 = smul.u32 8, %s22
      %s356 = smul.u32 8, %s22
      %p357 = scmp.lt.s32.totalorder %s356, 31
      %s358 = scalar_select %p357, %s356, 31
      %s359 = scalar_lea.vmem %s1, %s358
      %s360 = smul.u32 8, %s22
      %s361 = smul.u32 8, %s22
      %p362 = scmp.lt.s32.totalorder %s361, 31
      %s363 = scalar_select %p362, %s361, 31
      %s364 = scalar_lea.vmem %s2, %s363
      %s365 = smul.u32 8, %s22
      %s366 = smul.u32 8, %s22
      %p367 = scmp.lt.s32.totalorder %s366, 31
      %s368 = scalar_select %p367, %s366, 31
      %s369 = scalar_lea.vmem %s9, %s368
      %s370 = smul.u32 8, %s22
      %v371 = vld [vmem:[%s354] sm:$0xff]
      %v372 = vld [vmem:[%s359] sm:$0xff]
      %v373 = vld [vmem:[%s364] sm:$0xff]
      %v374 = vld [vmem:[%s3] sm:$0xff]
      %v375 = vld [vmem:[%s3 + $0x8] sm:$0xff]
      %v376 = vld [vmem:[%s3 + $0x10] sm:$0xf]
      %378 = vset.pattern.permute.xlu0 0
      %379 = vperm.xlu0 %378, %v374
      %v380 = vpop.permute.xlu0 %379
      %383 = vset.pattern.permute.xlu0 0
      %384 = vperm.xlu0 %383, %v375
      %v385 = vpop.permute.xlu0 %384
      %388 = vset.pattern.permute.xlu0 0
      %389 = vperm.xlu0 %388, %v376
      %v390 = vpop.permute.xlu0 %389
      %v393 = vlaneseq
      %v394 = vshrl.u32 %v393, 7
      %v395 = vsub.s32 0, %v394
      %v396 = vrot.slane %v371, %v395
      %v397 = vlaneseq
      %v398 = vshrl.u32 %v397, 7
      %v399 = vsub.s32 1, %v398
      %v400 = vrot.slane %v371, %v399
      %v401 = vlaneseq
      %v402 = vshrl.u32 %v401, 7
      %v403 = vsub.s32 2, %v402
      %v404 = vrot.slane %v371, %v403
      %v405 = vlaneseq
      %v406 = vshrl.u32 %v405, 7
      %v407 = vsub.s32 3, %v406
      %v408 = vrot.slane %v371, %v407
      %v409 = vlaneseq
      %v410 = vshrl.u32 %v409, 7
      %v411 = vsub.s32 4, %v410
      %v412 = vrot.slane %v371, %v411
      %v413 = vlaneseq
      %v414 = vshrl.u32 %v413, 7
      %v415 = vsub.s32 5, %v414
      %v416 = vrot.slane %v371, %v415
      %v417 = vlaneseq
      %v418 = vshrl.u32 %v417, 7
      %v419 = vsub.s32 6, %v418
      %v420 = vrot.slane %v371, %v419
      %v421 = vlaneseq
      %v422 = vshrl.u32 %v421, 7
      %v423 = vsub.s32 7, %v422
      %v424 = vrot.slane %v371, %v423
      %v433 = vmul.f32 %v380, %v396
      %v434 = vmul.f32 %v380, %v400
      %v435 = vmul.f32 %v380, %v404
      %v436 = vmul.f32 %v380, %v408
      %v437 = vmul.f32 %v380, %v412
      %v438 = vmul.f32 %v380, %v416
      %v439 = vmul.f32 %v380, %v420
      %v440 = vmul.f32 %v380, %v424
      %v441 = vmul.f32 %v385, %v396
      %v442 = vmul.f32 %v385, %v400
      %v443 = vmul.f32 %v385, %v404
      %v444 = vmul.f32 %v385, %v408
      %v445 = vmul.f32 %v385, %v412
      %v446 = vmul.f32 %v385, %v416
      %v447 = vmul.f32 %v385, %v420
      %v448 = vmul.f32 %v385, %v424
      %v449 = vmul.f32 %v390, %v396
      %v450 = vmul.f32 %v390, %v400
      %v451 = vmul.f32 %v390, %v404
      %v452 = vmul.f32 %v390, %v408
      %v453 = vmul.f32 %v390, %v412
      %v454 = vmul.f32 %v390, %v416
      %v455 = vmul.f32 %v390, %v420
      %v456 = vmul.f32 %v390, %v424
      %457 = vset.pattern.permute.xlu0 1
      %458 = vperm.xlu0 %457, %v374
      %v459 = vpop.permute.xlu0 %458
      %461 = vset.pattern.permute.xlu0 1
      %462 = vperm.xlu0 %461, %v375
      %v463 = vpop.permute.xlu0 %462
      %465 = vset.pattern.permute.xlu0 1
      %466 = vperm.xlu0 %465, %v376
      %v467 = vpop.permute.xlu0 %466
      %v470 = vlaneseq
      %v471 = vshrl.u32 %v470, 7
      %v472 = vsub.s32 0, %v471
      %v473 = vrot.slane %v372, %v472
      %v474 = vlaneseq
      %v475 = vshrl.u32 %v474, 7
      %v476 = vsub.s32 1, %v475
      %v477 = vrot.slane %v372, %v476
      %v478 = vlaneseq
      %v479 = vshrl.u32 %v478, 7
      %v480 = vsub.s32 2, %v479
      %v481 = vrot.slane %v372, %v480
      %v482 = vlaneseq
      %v483 = vshrl.u32 %v482, 7
      %v484 = vsub.s32 3, %v483
      %v485 = vrot.slane %v372, %v484
      %v486 = vlaneseq
      %v487 = vshrl.u32 %v486, 7
      %v488 = vsub.s32 4, %v487
      %v489 = vrot.slane %v372, %v488
      %v490 = vlaneseq
      %v491 = vshrl.u32 %v490, 7
      %v492 = vsub.s32 5, %v491
      %v493 = vrot.slane %v372, %v492
      %v494 = vlaneseq
      %v495 = vshrl.u32 %v494, 7
      %v496 = vsub.s32 6, %v495
      %v497 = vrot.slane %v372, %v496
      %v498 = vlaneseq
      %v499 = vshrl.u32 %v498, 7
      %v500 = vsub.s32 7, %v499
      %v501 = vrot.slane %v372, %v500
      %v510 = vmul.f32 %v459, %v473
      %v511 = vmul.f32 %v459, %v477
      %v512 = vmul.f32 %v459, %v481
      %v513 = vmul.f32 %v459, %v485
      %v514 = vmul.f32 %v459, %v489
      %v515 = vmul.f32 %v459, %v493
      %v516 = vmul.f32 %v459, %v497
      %v517 = vmul.f32 %v459, %v501
      %v518 = vmul.f32 %v463, %v473
      %v519 = vmul.f32 %v463, %v477
      %v520 = vmul.f32 %v463, %v481
      %v521 = vmul.f32 %v463, %v485
      %v522 = vmul.f32 %v463, %v489
      %v523 = vmul.f32 %v463, %v493
      %v524 = vmul.f32 %v463, %v497
      %v525 = vmul.f32 %v463, %v501
      %v526 = vmul.f32 %v467, %v473
      %v527 = vmul.f32 %v467, %v477
      %v528 = vmul.f32 %v467, %v481
      %v529 = vmul.f32 %v467, %v485
      %v530 = vmul.f32 %v467, %v489
      %v531 = vmul.f32 %v467, %v493
      %v532 = vmul.f32 %v467, %v497
      %v533 = vmul.f32 %v467, %v501
      %v534 = vadd.f32 %v433, %v510
      %v535 = vadd.f32 %v434, %v511
      %v536 = vadd.f32 %v435, %v512
      %v537 = vadd.f32 %v436, %v513
      %v538 = vadd.f32 %v437, %v514
      %v539 = vadd.f32 %v438, %v515
      %v540 = vadd.f32 %v439, %v516
      %v541 = vadd.f32 %v440, %v517
      %v542 = vadd.f32 %v441, %v518
      %v543 = vadd.f32 %v442, %v519
      %v544 = vadd.f32 %v443, %v520
      %v545 = vadd.f32 %v444, %v521
      %v546 = vadd.f32 %v445, %v522
      %v547 = vadd.f32 %v446, %v523
      %v548 = vadd.f32 %v447, %v524
      %v549 = vadd.f32 %v448, %v525
      %v550 = vadd.f32 %v449, %v526
      %v551 = vadd.f32 %v450, %v527
      %v552 = vadd.f32 %v451, %v528
      %v553 = vadd.f32 %v452, %v529
      %v554 = vadd.f32 %v453, %v530
      %v555 = vadd.f32 %v454, %v531
      %v556 = vadd.f32 %v455, %v532
      %v557 = vadd.f32 %v456, %v533
      %558 = vset.pattern.permute.xlu0 2
      %559 = vperm.xlu0 %558, %v374
      %v560 = vpop.permute.xlu0 %559
      %562 = vset.pattern.permute.xlu0 2
      %563 = vperm.xlu0 %562, %v375
      %v564 = vpop.permute.xlu0 %563
      %566 = vset.pattern.permute.xlu0 2
      %567 = vperm.xlu0 %566, %v376
      %v568 = vpop.permute.xlu0 %567
      %v571 = vlaneseq
      %v572 = vshrl.u32 %v571, 7
      %v573 = vsub.s32 0, %v572
      %v574 = vrot.slane %v373, %v573
      %v575 = vlaneseq
      %v576 = vshrl.u32 %v575, 7
      %v577 = vsub.s32 1, %v576
      %v578 = vrot.slane %v373, %v577
      %v579 = vlaneseq
      %v580 = vshrl.u32 %v579, 7
      %v581 = vsub.s32 2, %v580
      %v582 = vrot.slane %v373, %v581
      %v583 = vlaneseq
      %v584 = vshrl.u32 %v583, 7
      %v585 = vsub.s32 3, %v584
      %v586 = vrot.slane %v373, %v585
      %v587 = vlaneseq
      %v588 = vshrl.u32 %v587, 7
      %v589 = vsub.s32 4, %v588
      %v590 = vrot.slane %v373, %v589
      %v591 = vlaneseq
      %v592 = vshrl.u32 %v591, 7
      %v593 = vsub.s32 5, %v592
      %v594 = vrot.slane %v373, %v593
      %v595 = vlaneseq
      %v596 = vshrl.u32 %v595, 7
      %v597 = vsub.s32 6, %v596
      %v598 = vrot.slane %v373, %v597
      %v599 = vlaneseq
      %v600 = vshrl.u32 %v599, 7
      %v601 = vsub.s32 7, %v600
      %v602 = vrot.slane %v373, %v601
      %v611 = vmul.f32 %v560, %v574
      %v612 = vmul.f32 %v560, %v578
      %v613 = vmul.f32 %v560, %v582
      %v614 = vmul.f32 %v560, %v586
      %v615 = vmul.f32 %v560, %v590
      %v616 = vmul.f32 %v560, %v594
      %v617 = vmul.f32 %v560, %v598
      %v618 = vmul.f32 %v560, %v602
      %v619 = vmul.f32 %v564, %v574
      %v620 = vmul.f32 %v564, %v578
      %v621 = vmul.f32 %v564, %v582
      %v622 = vmul.f32 %v564, %v586
      %v623 = vmul.f32 %v564, %v590
      %v624 = vmul.f32 %v564, %v594
      %v625 = vmul.f32 %v564, %v598
      %v626 = vmul.f32 %v564, %v602
      %v627 = vmul.f32 %v568, %v574
      %v628 = vmul.f32 %v568, %v578
      %v629 = vmul.f32 %v568, %v582
      %v630 = vmul.f32 %v568, %v586
      %v631 = vmul.f32 %v568, %v590
      %v632 = vmul.f32 %v568, %v594
      %v633 = vmul.f32 %v568, %v598
      %v634 = vmul.f32 %v568, %v602
      %v635 = vadd.f32 %v534, %v611
      %v636 = vadd.f32 %v535, %v612
      %v637 = vadd.f32 %v536, %v613
      %v638 = vadd.f32 %v537, %v614
      %v639 = vadd.f32 %v538, %v615
      %v640 = vadd.f32 %v539, %v616
      %v641 = vadd.f32 %v540, %v617
      %v642 = vadd.f32 %v541, %v618
      %v643 = vadd.f32 %v542, %v619
      %v644 = vadd.f32 %v543, %v620
      %v645 = vadd.f32 %v544, %v621
      %v646 = vadd.f32 %v545, %v622
      %v647 = vadd.f32 %v546, %v623
      %v648 = vadd.f32 %v547, %v624
      %v649 = vadd.f32 %v548, %v625
      %v650 = vadd.f32 %v549, %v626
      %v651 = vadd.f32 %v550, %v627
      %v652 = vadd.f32 %v551, %v628
      %v653 = vadd.f32 %v552, %v629
      %v654 = vadd.f32 %v553, %v630
      %v655 = vadd.f32 %v554, %v631
      %v656 = vadd.f32 %v555, %v632
      %v657 = vadd.f32 %v556, %v633
      %v658 = vadd.f32 %v557, %v634
      %v659 = vld [vmem:[%s4] sm:$0xff]
      %v660 = vld [vmem:[%s4 + $0x8] sm:$0xff]
      %v661 = vld [vmem:[%s4 + $0x10] sm:$0xf]
      %663 = vset.pattern.permute.xlu0 0
      %664 = vperm.xlu0 %663, %v659
      %v665 = vpop.permute.xlu0 %664
      %668 = vset.pattern.permute.xlu0 0
      %669 = vperm.xlu0 %668, %v660
      %v670 = vpop.permute.xlu0 %669
      %673 = vset.pattern.permute.xlu0 0
      %674 = vperm.xlu0 %673, %v661
      %v675 = vpop.permute.xlu0 %674
      %v677 = vadd.f32 %v635, %v665
      %v678 = vadd.f32 %v636, %v665
      %v679 = vadd.f32 %v637, %v665
      %v680 = vadd.f32 %v638, %v665
      %v681 = vadd.f32 %v639, %v665
      %v682 = vadd.f32 %v640, %v665
      %v683 = vadd.f32 %v641, %v665
      %v684 = vadd.f32 %v642, %v665
      %v685 = vadd.f32 %v643, %v670
      %v686 = vadd.f32 %v644, %v670
      %v687 = vadd.f32 %v645, %v670
      %v688 = vadd.f32 %v646, %v670
      %v689 = vadd.f32 %v647, %v670
      %v690 = vadd.f32 %v648, %v670
      %v691 = vadd.f32 %v649, %v670
      %v692 = vadd.f32 %v650, %v670
      %v693 = vadd.f32 %v651, %v675
      %v694 = vadd.f32 %v652, %v675
      %v695 = vadd.f32 %v653, %v675
      %v696 = vadd.f32 %v654, %v675
      %v697 = vadd.f32 %v655, %v675
      %v698 = vadd.f32 %v656, %v675
      %v699 = vadd.f32 %v657, %v675
      %v700 = vadd.f32 %v658, %v675
      %v701 = vtanh.pop %v677
      %v702 = vtanh.pop %v678
      %v703 = vtanh.pop %v679
      %v704 = vtanh.pop %v680
      %v705 = vtanh.pop %v681
      %v706 = vtanh.pop %v682
      %v707 = vtanh.pop %v683
      %v708 = vtanh.pop %v684
      %v709 = vtanh.pop %v685
      %v710 = vtanh.pop %v686
      %v711 = vtanh.pop %v687
      %v712 = vtanh.pop %v688
      %v713 = vtanh.pop %v689
      %v714 = vtanh.pop %v690
      %v715 = vtanh.pop %v691
      %v716 = vtanh.pop %v692
      %v717 = vtanh.pop %v693
      %v718 = vtanh.pop %v694
      %v719 = vtanh.pop %v695
      %v720 = vtanh.pop %v696
      %v721 = vtanh.pop %v697
      %v722 = vtanh.pop %v698
      %v723 = vtanh.pop %v699
      %v724 = vtanh.pop %v700
      %v725 = vld [vmem:[%s5] sm:$0xff]
      %v726 = vld [vmem:[%s5 + $0x8] sm:$0xff]
      %v727 = vld [vmem:[%s5 + $0x10] sm:$0xf]
      %v728 = vld [vmem:[%s6] sm:$0xff]
      %v729 = vld [vmem:[%s6 + $0x8] sm:$0xff]
      %v730 = vld [vmem:[%s6 + $0x10] sm:$0xf]
      %732 = vset.pattern.permute.xlu0 0
      %733 = vperm.xlu0 %732, %v728
      %v734 = vpop.permute.xlu0 %733
      %737 = vset.pattern.permute.xlu0 0
      %738 = vperm.xlu0 %737, %v729
      %v739 = vpop.permute.xlu0 %738
      %742 = vset.pattern.permute.xlu0 0
      %743 = vperm.xlu0 %742, %v730
      %v744 = vpop.permute.xlu0 %743
      %vm746 = vcmask 162816
      %v748 = vsel %vm746, %v725, 0
      %v751 = vsel %vm746, %v726, 0
      %v754 = vsel %vm746, %v727, 0
      %vm756 = vcmask 1043456
      %v758 = vsel %vm756, %v717, 0
      %v761 = vsel %vm756, %v718, 0
      %v764 = vsel %vm756, %v719, 0
      %v767 = vsel %vm756, %v720, 0
      %v770 = vsel %vm756, %v721, 0
      %v773 = vsel %vm756, %v722, 0
      %v776 = vsel %vm756, %v723, 0
      %v779 = vsel %vm756, %v724, 0
      %781 = vmatprep.subr.mxu0 0.0
      %782 = vmatpush1.msra.mxu0 0.0
      %783 = vmatprep.subr.mxu0 0.0
      %784 = vmatpush1.msra.mxu0 0.0
      %785 = vmatprep.subr.mxu0 0.0
      %786 = vmatpush1.msra.mxu0 0.0
      %787 = vmatprep.subr.mxu0 0.0
      %788 = vmatpush1.msra.mxu0 0.0
      %789 = vmatprep.subr.mxu0 0.0
      %790 = vmatpush1.msra.mxu0 0.0
      %791 = vmatprep.subr.mxu0 0.0
      %792 = vmatpush1.msra.mxu0 0.0
      %793 = vmatprep.subr.mxu0 0.0
      %794 = vmatpush1.msra.mxu0 0.0
      %795 = vmatprep.subr.mxu0 0.0
      %796 = vmatpush1.msra.mxu0 0.0
      %797 = vmatprep.subr.mxu0 0.0
      %798 = vmatpush1.msra.mxu0 0.0
      %799 = vmatprep.subr.mxu0 0.0
      %800 = vmatpush1.msra.mxu0 0.0
      %801 = vmatprep.subr.mxu0 0.0
      %802 = vmatpush1.msra.mxu0 0.0
      %803 = vmatprep.subr.mxu0 0.0
      %804 = vmatpush1.msra.mxu0 0.0
      %805 = vmatprep.subr.mxu0 0.0
      %806 = vmatpush1.msra.mxu0 0.0
      %807 = vmatprep.subr.mxu0 %v761
      %808 = vmatpush1.msra.mxu0 %v758
      %809 = vmatprep.subr.mxu0 %v710
      %810 = vmatpush1.msra.mxu0 %v709
      %811 = vmatprep.subr.mxu0 %v702
      %812 = vmatpush1.msra.mxu0 %v701
      %813 = vmatprep.subr.mxu0 0.0
      %814 = vmatpush2.msra.mxu0 0.0
      %815 = vmatprep.subr.mxu0 0.0
      %816 = vmatpush2.msra.mxu0 0.0
      %817 = vmatprep.subr.mxu0 0.0
      %818 = vmatpush2.msra.mxu0 0.0
      %819 = vmatprep.subr.mxu0 0.0
      %820 = vmatpush2.msra.mxu0 0.0
      %821 = vmatprep.subr.mxu0 0.0
      %822 = vmatpush2.msra.mxu0 0.0
      %823 = vmatprep.subr.mxu0 0.0
      %824 = vmatpush2.msra.mxu0 0.0
      %825 = vmatprep.subr.mxu0 0.0
      %826 = vmatpush2.msra.mxu0 0.0
      %827 = vmatprep.subr.mxu0 0.0
      %828 = vmatpush2.msra.mxu0 0.0
      %829 = vmatprep.subr.mxu0 0.0
      %830 = vmatpush2.msra.mxu0 0.0
      %831 = vmatprep.subr.mxu0 0.0
      %832 = vmatpush2.msra.mxu0 0.0
      %833 = vmatprep.subr.mxu0 0.0
      %834 = vmatpush2.msra.mxu0 0.0
      %835 = vmatprep.subr.mxu0 0.0
      %836 = vmatpush2.msra.mxu0 0.0
      %837 = vmatprep.subr.mxu0 0.0
      %838 = vmatpush2.msra.mxu0 0.0
      %839 = vmatprep.subr.mxu0 0.0
      %840 = vmatpush2.msra.mxu0 0.0
      %841 = vmatprep.subr.mxu0 0.0
      %842 = vmatpush2.msra.mxu0 0.0
      %843 = vmatprep.subr.mxu0 0.0
      %844 = vmatpush2.msra.mxu0 0.0
      %845 = vmatprep.mubr.f32.mxu0 0.0
      %846 = vmatmul.mubr.f32.gmra.mxu0 %v748
      %v847 = vpop.f32.mrf.mxu0
      %v848 = vadd.f32 %v734, %v847
      %v849 = vpop.f32.mrf.mxu0
      %v850 = vadd.f32 %v734, %v849
      %851 = vmatprep.mubr.f32.mxu0 0.0
      %852 = vmatmul.mubr.f32.gmra.mxu0 %v751
      %v853 = vpop.f32.mrf.mxu0
      %v854 = vadd.f32 %v739, %v853
      %v855 = vpop.f32.mrf.mxu0
      %v856 = vadd.f32 %v739, %v855
      %857 = vmatprep.mubr.f32.mxu0 0.0
      %858 = vmatmul.mubr.f32.gmra.mxu0 %v754
      %v859 = vpop.f32.mrf.mxu0
      %v860 = vadd.f32 %v744, %v859
      %v861 = vpop.f32.mrf.mxu0
      %v862 = vadd.f32 %v744, %v861
      %863 = vdwg.mxu0
      %864 = vmatprep.subr.mxu0 0.0
      %865 = vmatpush1.msra.mxu0 0.0
      %866 = vmatprep.subr.mxu0 0.0
      %867 = vmatpush1.msra.mxu0 0.0
      %868 = vmatprep.subr.mxu0 0.0
      %869 = vmatpush1.msra.mxu0 0.0
      %870 = vmatprep.subr.mxu0 0.0
      %871 = vmatpush1.msra.mxu0 0.0
      %872 = vmatprep.subr.mxu0 0.0
      %873 = vmatpush1.msra.mxu0 0.0
      %874 = vmatprep.subr.mxu0 0.0
      %875 = vmatpush1.msra.mxu0 0.0
      %876 = vmatprep.subr.mxu0 0.0
      %877 = vmatpush1.msra.mxu0 0.0
      %878 = vmatprep.subr.mxu0 0.0
      %879 = vmatpush1.msra.mxu0 0.0
      %880 = vmatprep.subr.mxu0 0.0
      %881 = vmatpush1.msra.mxu0 0.0
      %882 = vmatprep.subr.mxu0 0.0
      %883 = vmatpush1.msra.mxu0 0.0
      %884 = vmatprep.subr.mxu0 0.0
      %885 = vmatpush1.msra.mxu0 0.0
      %886 = vmatprep.subr.mxu0 0.0
      %887 = vmatpush1.msra.mxu0 0.0
      %888 = vmatprep.subr.mxu0 0.0
      %889 = vmatpush1.msra.mxu0 0.0
      %890 = vmatprep.subr.mxu0 %v767
      %891 = vmatpush1.msra.mxu0 %v764
      %892 = vmatprep.subr.mxu0 %v712
      %893 = vmatpush1.msra.mxu0 %v711
      %894 = vmatprep.subr.mxu0 %v704
      %895 = vmatpush1.msra.mxu0 %v703
      %896 = vmatprep.subr.mxu0 0.0
      %897 = vmatpush2.msra.mxu0 0.0
      %898 = vmatprep.subr.mxu0 0.0
      %899 = vmatpush2.msra.mxu0 0.0
      %900 = vmatprep.subr.mxu0 0.0
      %901 = vmatpush2.msra.mxu0 0.0
      %902 = vmatprep.subr.mxu0 0.0
      %903 = vmatpush2.msra.mxu0 0.0
      %904 = vmatprep.subr.mxu0 0.0
      %905 = vmatpush2.msra.mxu0 0.0
      %906 = vmatprep.subr.mxu0 0.0
      %907 = vmatpush2.msra.mxu0 0.0
      %908 = vmatprep.subr.mxu0 0.0
      %909 = vmatpush2.msra.mxu0 0.0
      %910 = vmatprep.subr.mxu0 0.0
      %911 = vmatpush2.msra.mxu0 0.0
      %912 = vmatprep.subr.mxu0 0.0
      %913 = vmatpush2.msra.mxu0 0.0
      %914 = vmatprep.subr.mxu0 0.0
      %915 = vmatpush2.msra.mxu0 0.0
      %916 = vmatprep.subr.mxu0 0.0
      %917 = vmatpush2.msra.mxu0 0.0
      %918 = vmatprep.subr.mxu0 0.0
      %919 = vmatpush2.msra.mxu0 0.0
      %920 = vmatprep.subr.mxu0 0.0
      %921 = vmatpush2.msra.mxu0 0.0
      %922 = vmatprep.subr.mxu0 0.0
      %923 = vmatpush2.msra.mxu0 0.0
      %924 = vmatprep.subr.mxu0 0.0
      %925 = vmatpush2.msra.mxu0 0.0
      %926 = vmatprep.subr.mxu0 0.0
      %927 = vmatpush2.msra.mxu0 0.0
      %928 = vmatprep.mubr.f32.mxu0 0.0
      %929 = vmatmul.mubr.f32.gmra.mxu0 %v748
      %v930 = vpop.f32.mrf.mxu0
      %v931 = vadd.f32 %v734, %v930
      %v932 = vpop.f32.mrf.mxu0
      %v933 = vadd.f32 %v734, %v932
      %934 = vmatprep.mubr.f32.mxu0 0.0
      %935 = vmatmul.mubr.f32.gmra.mxu0 %v751
      %v936 = vpop.f32.mrf.mxu0
      %v937 = vadd.f32 %v739, %v936
      %v938 = vpop.f32.mrf.mxu0
      %v939 = vadd.f32 %v739, %v938
      %940 = vmatprep.mubr.f32.mxu0 0.0
      %941 = vmatmul.mubr.f32.gmra.mxu0 %v754
      %v942 = vpop.f32.mrf.mxu0
      %v943 = vadd.f32 %v744, %v942
      %v944 = vpop.f32.mrf.mxu0
      %v945 = vadd.f32 %v744, %v944
      %946 = vdwg.mxu0
      %947 = vmatprep.subr.mxu0 0.0
      %948 = vmatpush1.msra.mxu0 0.0
      %949 = vmatprep.subr.mxu0 0.0
      %950 = vmatpush1.msra.mxu0 0.0
      %951 = vmatprep.subr.mxu0 0.0
      %952 = vmatpush1.msra.mxu0 0.0
      %953 = vmatprep.subr.mxu0 0.0
      %954 = vmatpush1.msra.mxu0 0.0
      %955 = vmatprep.subr.mxu0 0.0
      %956 = vmatpush1.msra.mxu0 0.0
      %957 = vmatprep.subr.mxu0 0.0
      %958 = vmatpush1.msra.mxu0 0.0
      %959 = vmatprep.subr.mxu0 0.0
      %960 = vmatpush1.msra.mxu0 0.0
      %961 = vmatprep.subr.mxu0 0.0
      %962 = vmatpush1.msra.mxu0 0.0
      %963 = vmatprep.subr.mxu0 0.0
      %964 = vmatpush1.msra.mxu0 0.0
      %965 = vmatprep.subr.mxu0 0.0
      %966 = vmatpush1.msra.mxu0 0.0
      %967 = vmatprep.subr.mxu0 0.0
      %968 = vmatpush1.msra.mxu0 0.0
      %969 = vmatprep.subr.mxu0 0.0
      %970 = vmatpush1.msra.mxu0 0.0
      %971 = vmatprep.subr.mxu0 0.0
      %972 = vmatpush1.msra.mxu0 0.0
      %973 = vmatprep.subr.mxu0 %v773
      %974 = vmatpush1.msra.mxu0 %v770
      %975 = vmatprep.subr.mxu0 %v714
      %976 = vmatpush1.msra.mxu0 %v713
      %977 = vmatprep.subr.mxu0 %v706
      %978 = vmatpush1.msra.mxu0 %v705
      %979 = vmatprep.subr.mxu0 0.0
      %980 = vmatpush2.msra.mxu0 0.0
      %981 = vmatprep.subr.mxu0 0.0
      %982 = vmatpush2.msra.mxu0 0.0
      %983 = vmatprep.subr.mxu0 0.0
      %984 = vmatpush2.msra.mxu0 0.0
      %985 = vmatprep.subr.mxu0 0.0
      %986 = vmatpush2.msra.mxu0 0.0
      %987 = vmatprep.subr.mxu0 0.0
      %988 = vmatpush2.msra.mxu0 0.0
      %989 = vmatprep.subr.mxu0 0.0
      %990 = vmatpush2.msra.mxu0 0.0
      %991 = vmatprep.subr.mxu0 0.0
      %992 = vmatpush2.msra.mxu0 0.0
      %993 = vmatprep.subr.mxu0 0.0
      %994 = vmatpush2.msra.mxu0 0.0
      %995 = vmatprep.subr.mxu0 0.0
      %996 = vmatpush2.msra.mxu0 0.0
      %997 = vmatprep.subr.mxu0 0.0
      %998 = vmatpush2.msra.mxu0 0.0
      %999 = vmatprep.subr.mxu0 0.0
      %1000 = vmatpush2.msra.mxu0 0.0
      %1001 = vmatprep.subr.mxu0 0.0
      %1002 = vmatpush2.msra.mxu0 0.0
      %1003 = vmatprep.subr.mxu0 0.0
      %1004 = vmatpush2.msra.mxu0 0.0
      %1005 = vmatprep.subr.mxu0 0.0
      %1006 = vmatpush2.msra.mxu0 0.0
      %1007 = vmatprep.subr.mxu0 0.0
      %1008 = vmatpush2.msra.mxu0 0.0
      %1009 = vmatprep.subr.mxu0 0.0
      %1010 = vmatpush2.msra.mxu0 0.0
      %1011 = vmatprep.mubr.f32.mxu0 0.0
      %1012 = vmatmul.mubr.f32.gmra.mxu0 %v748
      %v1013 = vpop.f32.mrf.mxu0
      %v1014 = vadd.f32 %v734, %v1013
      %v1015 = vpop.f32.mrf.mxu0
      %v1016 = vadd.f32 %v734, %v1015
      %1017 = vmatprep.mubr.f32.mxu0 0.0
      %1018 = vmatmul.mubr.f32.gmra.mxu0 %v751
      %v1019 = vpop.f32.mrf.mxu0
      %v1020 = vadd.f32 %v739, %v1019
      %v1021 = vpop.f32.mrf.mxu0
      %v1022 = vadd.f32 %v739, %v1021
      %1023 = vmatprep.mubr.f32.mxu0 0.0
      %1024 = vmatmul.mubr.f32.gmra.mxu0 %v754
      %v1025 = vpop.f32.mrf.mxu0
      %v1026 = vadd.f32 %v744, %v1025
      %v1027 = vpop.f32.mrf.mxu0
      %v1028 = vadd.f32 %v744, %v1027
      %1029 = vdwg.mxu0
      %1030 = vmatprep.subr.mxu0 0.0
      %1031 = vmatpush1.msra.mxu0 0.0
      %1032 = vmatprep.subr.mxu0 0.0
      %1033 = vmatpush1.msra.mxu0 0.0
      %1034 = vmatprep.subr.mxu0 0.0
      %1035 = vmatpush1.msra.mxu0 0.0
      %1036 = vmatprep.subr.mxu0 0.0
      %1037 = vmatpush1.msra.mxu0 0.0
      %1038 = vmatprep.subr.mxu0 0.0
      %1039 = vmatpush1.msra.mxu0 0.0
      %1040 = vmatprep.subr.mxu0 0.0
      %1041 = vmatpush1.msra.mxu0 0.0
      %1042 = vmatprep.subr.mxu0 0.0
      %1043 = vmatpush1.msra.mxu0 0.0
      %1044 = vmatprep.subr.mxu0 0.0
      %1045 = vmatpush1.msra.mxu0 0.0
      %1046 = vmatprep.subr.mxu0 0.0
      %1047 = vmatpush1.msra.mxu0 0.0
      %1048 = vmatprep.subr.mxu0 0.0
      %1049 = vmatpush1.msra.mxu0 0.0
      %1050 = vmatprep.subr.mxu0 0.0
      %1051 = vmatpush1.msra.mxu0 0.0
      %1052 = vmatprep.subr.mxu0 0.0
      %1053 = vmatpush1.msra.mxu0 0.0
      %1054 = vmatprep.subr.mxu0 0.0
      %1055 = vmatpush1.msra.mxu0 0.0
      %1056 = vmatprep.subr.mxu0 %v779
      %1057 = vmatpush1.msra.mxu0 %v776
      %1058 = vmatprep.subr.mxu0 %v716
      %1059 = vmatpush1.msra.mxu0 %v715
      %1060 = vmatprep.subr.mxu0 %v708
      %1061 = vmatpush1.msra.mxu0 %v707
      %1062 = vmatprep.subr.mxu0 0.0
      %1063 = vmatpush2.msra.mxu0 0.0
      %1064 = vmatprep.subr.mxu0 0.0
      %1065 = vmatpush2.msra.mxu0 0.0
      %1066 = vmatprep.subr.mxu0 0.0
      %1067 = vmatpush2.msra.mxu0 0.0
      %1068 = vmatprep.subr.mxu0 0.0
      %1069 = vmatpush2.msra.mxu0 0.0
      %1070 = vmatprep.subr.mxu0 0.0
      %1071 = vmatpush2.msra.mxu0 0.0
      %1072 = vmatprep.subr.mxu0 0.0
      %1073 = vmatpush2.msra.mxu0 0.0
      %1074 = vmatprep.subr.mxu0 0.0
      %1075 = vmatpush2.msra.mxu0 0.0
      %1076 = vmatprep.subr.mxu0 0.0
      %1077 = vmatpush2.msra.mxu0 0.0
      %1078 = vmatprep.subr.mxu0 0.0
      %1079 = vmatpush2.msra.mxu0 0.0
      %1080 = vmatprep.subr.mxu0 0.0
      %1081 = vmatpush2.msra.mxu0 0.0
      %1082 = vmatprep.subr.mxu0 0.0
      %1083 = vmatpush2.msra.mxu0 0.0
      %1084 = vmatprep.subr.mxu0 0.0
      %1085 = vmatpush2.msra.mxu0 0.0
      %1086 = vmatprep.subr.mxu0 0.0
      %1087 = vmatpush2.msra.mxu0 0.0
      %1088 = vmatprep.subr.mxu0 0.0
      %1089 = vmatpush2.msra.mxu0 0.0
      %1090 = vmatprep.subr.mxu0 0.0
      %1091 = vmatpush2.msra.mxu0 0.0
      %1092 = vmatprep.subr.mxu0 0.0
      %1093 = vmatpush2.msra.mxu0 0.0
      %1094 = vmatprep.mubr.f32.mxu0 0.0
      %1095 = vmatmul.mubr.f32.gmra.mxu0 %v748
      %v1096 = vpop.f32.mrf.mxu0
      %v1097 = vadd.f32 %v734, %v1096
      %v1098 = vpop.f32.mrf.mxu0
      %v1099 = vadd.f32 %v734, %v1098
      %1100 = vmatprep.mubr.f32.mxu0 0.0
      %1101 = vmatmul.mubr.f32.gmra.mxu0 %v751
      %v1102 = vpop.f32.mrf.mxu0
      %v1103 = vadd.f32 %v739, %v1102
      %v1104 = vpop.f32.mrf.mxu0
      %v1105 = vadd.f32 %v739, %v1104
      %1106 = vmatprep.mubr.f32.mxu0 0.0
      %1107 = vmatmul.mubr.f32.gmra.mxu0 %v754
      %v1108 = vpop.f32.mrf.mxu0
      %v1109 = vadd.f32 %v744, %v1108
      %v1110 = vpop.f32.mrf.mxu0
      %v1111 = vadd.f32 %v744, %v1110
      %1112 = vdwg.mxu0
      %v1113 = vtanh.pop %v848
      %v1114 = vtanh.pop %v850
      %v1115 = vtanh.pop %v931
      %v1116 = vtanh.pop %v933
      %v1117 = vtanh.pop %v1014
      %v1118 = vtanh.pop %v1016
      %v1119 = vtanh.pop %v1097
      %v1120 = vtanh.pop %v1099
      %v1121 = vtanh.pop %v854
      %v1122 = vtanh.pop %v856
      %v1123 = vtanh.pop %v937
      %v1124 = vtanh.pop %v939
      %v1125 = vtanh.pop %v1020
      %v1126 = vtanh.pop %v1022
      %v1127 = vtanh.pop %v1103
      %v1128 = vtanh.pop %v1105
      %v1129 = vtanh.pop %v860
      %v1130 = vtanh.pop %v862
      %v1131 = vtanh.pop %v943
      %v1132 = vtanh.pop %v945
      %v1133 = vtanh.pop %v1026
      %v1134 = vtanh.pop %v1028
      %v1135 = vtanh.pop %v1109
      %v1136 = vtanh.pop %v1111
      %s1137 = scalar_lea.vmem %s5, 24
      %v1138 = vld [vmem:[%s1137] sm:$0xff]
      %v1139 = vld [vmem:[%s1137 + $0x8] sm:$0xff]
      %v1140 = vld [vmem:[%s1137 + $0x10] sm:$0xf]
      %s1141 = scalar_lea.vmem %s6, 24
      %v1142 = vld [vmem:[%s1141] sm:$0xff]
      %v1143 = vld [vmem:[%s1141 + $0x8] sm:$0xff]
      %v1144 = vld [vmem:[%s1141 + $0x10] sm:$0xf]
      %1146 = vset.pattern.permute.xlu0 0
      %1147 = vperm.xlu0 %1146, %v1142
      %v1148 = vpop.permute.xlu0 %1147
      %1151 = vset.pattern.permute.xlu0 0
      %1152 = vperm.xlu0 %1151, %v1143
      %v1153 = vpop.permute.xlu0 %1152
      %1156 = vset.pattern.permute.xlu0 0
      %1157 = vperm.xlu0 %1156, %v1144
      %v1158 = vpop.permute.xlu0 %1157
      %v1161 = vsel %vm746, %v1138, 0
      %v1164 = vsel %vm746, %v1139, 0
      %v1167 = vsel %vm746, %v1140, 0
      %v1170 = vsel %vm756, %v1129, 0
      %v1173 = vsel %vm756, %v1130, 0
      %v1176 = vsel %vm756, %v1131, 0
      %v1179 = vsel %vm756, %v1132, 0
      %v1182 = vsel %vm756, %v1133, 0
      %v1185 = vsel %vm756, %v1134, 0
      %v1188 = vsel %vm756, %v1135, 0
      %v1191 = vsel %vm756, %v1136, 0
      %1193 = vmatprep.subr.mxu0 0.0
      %1194 = vmatpush1.msra.mxu0 0.0
      %1195 = vmatprep.subr.mxu0 0.0
      %1196 = vmatpush1.msra.mxu0 0.0
      %1197 = vmatprep.subr.mxu0 0.0
      %1198 = vmatpush1.msra.mxu0 0.0
      %1199 = vmatprep.subr.mxu0 0.0
      %1200 = vmatpush1.msra.mxu0 0.0
      %1201 = vmatprep.subr.mxu0 0.0
      %1202 = vmatpush1.msra.mxu0 0.0
      %1203 = vmatprep.subr.mxu0 0.0
      %1204 = vmatpush1.msra.mxu0 0.0
      %1205 = vmatprep.subr.mxu0 0.0
      %1206 = vmatpush1.msra.mxu0 0.0
      %1207 = vmatprep.subr.mxu0 0.0
      %1208 = vmatpush1.msra.mxu0 0.0
      %1209 = vmatprep.subr.mxu0 0.0
      %1210 = vmatpush1.msra.mxu0 0.0
      %1211 = vmatprep.subr.mxu0 0.0
      %1212 = vmatpush1.msra.mxu0 0.0
      %1213 = vmatprep.subr.mxu0 0.0
      %1214 = vmatpush1.msra.mxu0 0.0
      %1215 = vmatprep.subr.mxu0 0.0
      %1216 = vmatpush1.msra.mxu0 0.0
      %1217 = vmatprep.subr.mxu0 0.0
      %1218 = vmatpush1.msra.mxu0 0.0
      %1219 = vmatprep.subr.mxu0 %v1173
      %1220 = vmatpush1.msra.mxu0 %v1170
      %1221 = vmatprep.subr.mxu0 %v1122
      %1222 = vmatpush1.msra.mxu0 %v1121
      %1223 = vmatprep.subr.mxu0 %v1114
      %1224 = vmatpush1.msra.mxu0 %v1113
      %1225 = vmatprep.subr.mxu0 0.0
      %1226 = vmatpush2.msra.mxu0 0.0
      %1227 = vmatprep.subr.mxu0 0.0
      %1228 = vmatpush2.msra.mxu0 0.0
      %1229 = vmatprep.subr.mxu0 0.0
      %1230 = vmatpush2.msra.mxu0 0.0
      %1231 = vmatprep.subr.mxu0 0.0
      %1232 = vmatpush2.msra.mxu0 0.0
      %1233 = vmatprep.subr.mxu0 0.0
      %1234 = vmatpush2.msra.mxu0 0.0
      %1235 = vmatprep.subr.mxu0 0.0
      %1236 = vmatpush2.msra.mxu0 0.0
      %1237 = vmatprep.subr.mxu0 0.0
      %1238 = vmatpush2.msra.mxu0 0.0
      %1239 = vmatprep.subr.mxu0 0.0
      %1240 = vmatpush2.msra.mxu0 0.0
      %1241 = vmatprep.subr.mxu0 0.0
      %1242 = vmatpush2.msra.mxu0 0.0
      %1243 = vmatprep.subr.mxu0 0.0
      %1244 = vmatpush2.msra.mxu0 0.0
      %1245 = vmatprep.subr.mxu0 0.0
      %1246 = vmatpush2.msra.mxu0 0.0
      %1247 = vmatprep.subr.mxu0 0.0
      %1248 = vmatpush2.msra.mxu0 0.0
      %1249 = vmatprep.subr.mxu0 0.0
      %1250 = vmatpush2.msra.mxu0 0.0
      %1251 = vmatprep.subr.mxu0 0.0
      %1252 = vmatpush2.msra.mxu0 0.0
      %1253 = vmatprep.subr.mxu0 0.0
      %1254 = vmatpush2.msra.mxu0 0.0
      %1255 = vmatprep.subr.mxu0 0.0
      %1256 = vmatpush2.msra.mxu0 0.0
      %1257 = vmatprep.mubr.f32.mxu0 0.0
      %1258 = vmatmul.mubr.f32.gmra.mxu0 %v1161
      %v1259 = vpop.f32.mrf.mxu0
      %v1260 = vadd.f32 %v1148, %v1259
      %v1261 = vpop.f32.mrf.mxu0
      %v1262 = vadd.f32 %v1148, %v1261
      %1263 = vmatprep.mubr.f32.mxu0 0.0
      %1264 = vmatmul.mubr.f32.gmra.mxu0 %v1164
      %v1265 = vpop.f32.mrf.mxu0
      %v1266 = vadd.f32 %v1153, %v1265
      %v1267 = vpop.f32.mrf.mxu0
      %v1268 = vadd.f32 %v1153, %v1267
      %1269 = vmatprep.mubr.f32.mxu0 0.0
      %1270 = vmatmul.mubr.f32.gmra.mxu0 %v1167
      %v1271 = vpop.f32.mrf.mxu0
      %v1272 = vadd.f32 %v1158, %v1271
      %v1273 = vpop.f32.mrf.mxu0
      %v1274 = vadd.f32 %v1158, %v1273
      %1275 = vdwg.mxu0
      %1276 = vmatprep.subr.mxu0 0.0
      %1277 = vmatpush1.msra.mxu0 0.0
      %1278 = vmatprep.subr.mxu0 0.0
      %1279 = vmatpush1.msra.mxu0 0.0
      %1280 = vmatprep.subr.mxu0 0.0
      %1281 = vmatpush1.msra.mxu0 0.0
      %1282 = vmatprep.subr.mxu0 0.0
      %1283 = vmatpush1.msra.mxu0 0.0
      %1284 = vmatprep.subr.mxu0 0.0
      %1285 = vmatpush1.msra.mxu0 0.0
      %1286 = vmatprep.subr.mxu0 0.0
      %1287 = vmatpush1.msra.mxu0 0.0
      %1288 = vmatprep.subr.mxu0 0.0
      %1289 = vmatpush1.msra.mxu0 0.0
      %1290 = vmatprep.subr.mxu0 0.0
      %1291 = vmatpush1.msra.mxu0 0.0
      %1292 = vmatprep.subr.mxu0 0.0
      %1293 = vmatpush1.msra.mxu0 0.0
      %1294 = vmatprep.subr.mxu0 0.0
      %1295 = vmatpush1.msra.mxu0 0.0
      %1296 = vmatprep.subr.mxu0 0.0
      %1297 = vmatpush1.msra.mxu0 0.0
      %1298 = vmatprep.subr.mxu0 0.0
      %1299 = vmatpush1.msra.mxu0 0.0
      %1300 = vmatprep.subr.mxu0 0.0
      %1301 = vmatpush1.msra.mxu0 0.0
      %1302 = vmatprep.subr.mxu0 %v1179
      %1303 = vmatpush1.msra.mxu0 %v1176
      %1304 = vmatprep.subr.mxu0 %v1124
      %1305 = vmatpush1.msra.mxu0 %v1123
      %1306 = vmatprep.subr.mxu0 %v1116
      %1307 = vmatpush1.msra.mxu0 %v1115
      %1308 = vmatprep.subr.mxu0 0.0
      %1309 = vmatpush2.msra.mxu0 0.0
      %1310 = vmatprep.subr.mxu0 0.0
      %1311 = vmatpush2.msra.mxu0 0.0
      %1312 = vmatprep.subr.mxu0 0.0
      %1313 = vmatpush2.msra.mxu0 0.0
      %1314 = vmatprep.subr.mxu0 0.0
      %1315 = vmatpush2.msra.mxu0 0.0
      %1316 = vmatprep.subr.mxu0 0.0
      %1317 = vmatpush2.msra.mxu0 0.0
      %1318 = vmatprep.subr.mxu0 0.0
      %1319 = vmatpush2.msra.mxu0 0.0
      %1320 = vmatprep.subr.mxu0 0.0
      %1321 = vmatpush2.msra.mxu0 0.0
      %1322 = vmatprep.subr.mxu0 0.0
      %1323 = vmatpush2.msra.mxu0 0.0
      %1324 = vmatprep.subr.mxu0 0.0
      %1325 = vmatpush2.msra.mxu0 0.0
      %1326 = vmatprep.subr.mxu0 0.0
      %1327 = vmatpush2.msra.mxu0 0.0
      %1328 = vmatprep.subr.mxu0 0.0
      %1329 = vmatpush2.msra.mxu0 0.0
      %1330 = vmatprep.subr.mxu0 0.0
      %1331 = vmatpush2.msra.mxu0 0.0
      %1332 = vmatprep.subr.mxu0 0.0
      %1333 = vmatpush2.msra.mxu0 0.0
      %1334 = vmatprep.subr.mxu0 0.0
      %1335 = vmatpush2.msra.mxu0 0.0
      %1336 = vmatprep.subr.mxu0 0.0
      %1337 = vmatpush2.msra.mxu0 0.0
      %1338 = vmatprep.subr.mxu0 0.0
      %1339 = vmatpush2.msra.mxu0 0.0
      %1340 = vmatprep.mubr.f32.mxu0 0.0
      %1341 = vmatmul.mubr.f32.gmra.mxu0 %v1161
      %v1342 = vpop.f32.mrf.mxu0
      %v1343 = vadd.f32 %v1148, %v1342
      %v1344 = vpop.f32.mrf.mxu0
      %v1345 = vadd.f32 %v1148, %v1344
      %1346 = vmatprep.mubr.f32.mxu0 0.0
      %1347 = vmatmul.mubr.f32.gmra.mxu0 %v1164
      %v1348 = vpop.f32.mrf.mxu0
      %v1349 = vadd.f32 %v1153, %v1348
      %v1350 = vpop.f32.mrf.mxu0
      %v1351 = vadd.f32 %v1153, %v1350
      %1352 = vmatprep.mubr.f32.mxu0 0.0
      %1353 = vmatmul.mubr.f32.gmra.mxu0 %v1167
      %v1354 = vpop.f32.mrf.mxu0
      %v1355 = vadd.f32 %v1158, %v1354
      %v1356 = vpop.f32.mrf.mxu0
      %v1357 = vadd.f32 %v1158, %v1356
      %1358 = vdwg.mxu0
      %1359 = vmatprep.subr.mxu0 0.0
      %1360 = vmatpush1.msra.mxu0 0.0
      %1361 = vmatprep.subr.mxu0 0.0
      %1362 = vmatpush1.msra.mxu0 0.0
      %1363 = vmatprep.subr.mxu0 0.0
      %1364 = vmatpush1.msra.mxu0 0.0
      %1365 = vmatprep.subr.mxu0 0.0
      %1366 = vmatpush1.msra.mxu0 0.0
      %1367 = vmatprep.subr.mxu0 0.0
      %1368 = vmatpush1.msra.mxu0 0.0
      %1369 = vmatprep.subr.mxu0 0.0
      %1370 = vmatpush1.msra.mxu0 0.0
      %1371 = vmatprep.subr.mxu0 0.0
      %1372 = vmatpush1.msra.mxu0 0.0
      %1373 = vmatprep.subr.mxu0 0.0
      %1374 = vmatpush1.msra.mxu0 0.0
      %1375 = vmatprep.subr.mxu0 0.0
      %1376 = vmatpush1.msra.mxu0 0.0
      %1377 = vmatprep.subr.mxu0 0.0
      %1378 = vmatpush1.msra.mxu0 0.0
      %1379 = vmatprep.subr.mxu0 0.0
      %1380 = vmatpush1.msra.mxu0 0.0
      %1381 = vmatprep.subr.mxu0 0.0
      %1382 = vmatpush1.msra.mxu0 0.0
      %1383 = vmatprep.subr.mxu0 0.0
      %1384 = vmatpush1.msra.mxu0 0.0
      %1385 = vmatprep.subr.mxu0 %v1185
      %1386 = vmatpush1.msra.mxu0 %v1182
      %1387 = vmatprep.subr.mxu0 %v1126
      %1388 = vmatpush1.msra.mxu0 %v1125
      %1389 = vmatprep.subr.mxu0 %v1118
      %1390 = vmatpush1.msra.mxu0 %v1117
      %1391 = vmatprep.subr.mxu0 0.0
      %1392 = vmatpush2.msra.mxu0 0.0
      %1393 = vmatprep.subr.mxu0 0.0
      %1394 = vmatpush2.msra.mxu0 0.0
      %1395 = vmatprep.subr.mxu0 0.0
      %1396 = vmatpush2.msra.mxu0 0.0
      %1397 = vmatprep.subr.mxu0 0.0
      %1398 = vmatpush2.msra.mxu0 0.0
      %1399 = vmatprep.subr.mxu0 0.0
      %1400 = vmatpush2.msra.mxu0 0.0
      %1401 = vmatprep.subr.mxu0 0.0
      %1402 = vmatpush2.msra.mxu0 0.0
      %1403 = vmatprep.subr.mxu0 0.0
      %1404 = vmatpush2.msra.mxu0 0.0
      %1405 = vmatprep.subr.mxu0 0.0
      %1406 = vmatpush2.msra.mxu0 0.0
      %1407 = vmatprep.subr.mxu0 0.0
      %1408 = vmatpush2.msra.mxu0 0.0
      %1409 = vmatprep.subr.mxu0 0.0
      %1410 = vmatpush2.msra.mxu0 0.0
      %1411 = vmatprep.subr.mxu0 0.0
      %1412 = vmatpush2.msra.mxu0 0.0
      %1413 = vmatprep.subr.mxu0 0.0
      %1414 = vmatpush2.msra.mxu0 0.0
      %1415 = vmatprep.subr.mxu0 0.0
      %1416 = vmatpush2.msra.mxu0 0.0
      %1417 = vmatprep.subr.mxu0 0.0
      %1418 = vmatpush2.msra.mxu0 0.0
      %1419 = vmatprep.subr.mxu0 0.0
      %1420 = vmatpush2.msra.mxu0 0.0
      %1421 = vmatprep.subr.mxu0 0.0
      %1422 = vmatpush2.msra.mxu0 0.0
      %1423 = vmatprep.mubr.f32.mxu0 0.0
      %1424 = vmatmul.mubr.f32.gmra.mxu0 %v1161
      %v1425 = vpop.f32.mrf.mxu0
      %v1426 = vadd.f32 %v1148, %v1425
      %v1427 = vpop.f32.mrf.mxu0
      %v1428 = vadd.f32 %v1148, %v1427
      %1429 = vmatprep.mubr.f32.mxu0 0.0
      %1430 = vmatmul.mubr.f32.gmra.mxu0 %v1164
      %v1431 = vpop.f32.mrf.mxu0
      %v1432 = vadd.f32 %v1153, %v1431
      %v1433 = vpop.f32.mrf.mxu0
      %v1434 = vadd.f32 %v1153, %v1433
      %1435 = vmatprep.mubr.f32.mxu0 0.0
      %1436 = vmatmul.mubr.f32.gmra.mxu0 %v1167
      %v1437 = vpop.f32.mrf.mxu0
      %v1438 = vadd.f32 %v1158, %v1437
      %v1439 = vpop.f32.mrf.mxu0
      %v1440 = vadd.f32 %v1158, %v1439
      %1441 = vdwg.mxu0
      %1442 = vmatprep.subr.mxu0 0.0
      %1443 = vmatpush1.msra.mxu0 0.0
      %1444 = vmatprep.subr.mxu0 0.0
      %1445 = vmatpush1.msra.mxu0 0.0
      %1446 = vmatprep.subr.mxu0 0.0
      %1447 = vmatpush1.msra.mxu0 0.0
      %1448 = vmatprep.subr.mxu0 0.0
      %1449 = vmatpush1.msra.mxu0 0.0
      %1450 = vmatprep.subr.mxu0 0.0
      %1451 = vmatpush1.msra.mxu0 0.0
      %1452 = vmatprep.subr.mxu0 0.0
      %1453 = vmatpush1.msra.mxu0 0.0
      %1454 = vmatprep.subr.mxu0 0.0
      %1455 = vmatpush1.msra.mxu0 0.0
      %1456 = vmatprep.subr.mxu0 0.0
      %1457 = vmatpush1.msra.mxu0 0.0
      %1458 = vmatprep.subr.mxu0 0.0
      %1459 = vmatpush1.msra.mxu0 0.0
      %1460 = vmatprep.subr.mxu0 0.0
      %1461 = vmatpush1.msra.mxu0 0.0
      %1462 = vmatprep.subr.mxu0 0.0
      %1463 = vmatpush1.msra.mxu0 0.0
      %1464 = vmatprep.subr.mxu0 0.0
      %1465 = vmatpush1.msra.mxu0 0.0
      %1466 = vmatprep.subr.mxu0 0.0
      %1467 = vmatpush1.msra.mxu0 0.0
      %1468 = vmatprep.subr.mxu0 %v1191
      %1469 = vmatpush1.msra.mxu0 %v1188
      %1470 = vmatprep.subr.mxu0 %v1128
      %1471 = vmatpush1.msra.mxu0 %v1127
      %1472 = vmatprep.subr.mxu0 %v1120
      %1473 = vmatpush1.msra.mxu0 %v1119
      %1474 = vmatprep.subr.mxu0 0.0
      %1475 = vmatpush2.msra.mxu0 0.0
      %1476 = vmatprep.subr.mxu0 0.0
      %1477 = vmatpush2.msra.mxu0 0.0
      %1478 = vmatprep.subr.mxu0 0.0
      %1479 = vmatpush2.msra.mxu0 0.0
      %1480 = vmatprep.subr.mxu0 0.0
      %1481 = vmatpush2.msra.mxu0 0.0
      %1482 = vmatprep.subr.mxu0 0.0
      %1483 = vmatpush2.msra.mxu0 0.0
      %1484 = vmatprep.subr.mxu0 0.0
      %1485 = vmatpush2.msra.mxu0 0.0
      %1486 = vmatprep.subr.mxu0 0.0
      %1487 = vmatpush2.msra.mxu0 0.0
      %1488 = vmatprep.subr.mxu0 0.0
      %1489 = vmatpush2.msra.mxu0 0.0
      %1490 = vmatprep.subr.mxu0 0.0
      %1491 = vmatpush2.msra.mxu0 0.0
      %1492 = vmatprep.subr.mxu0 0.0
      %1493 = vmatpush2.msra.mxu0 0.0
      %1494 = vmatprep.subr.mxu0 0.0
      %1495 = vmatpush2.msra.mxu0 0.0
      %1496 = vmatprep.subr.mxu0 0.0
      %1497 = vmatpush2.msra.mxu0 0.0
      %1498 = vmatprep.subr.mxu0 0.0
      %1499 = vmatpush2.msra.mxu0 0.0
      %1500 = vmatprep.subr.mxu0 0.0
      %1501 = vmatpush2.msra.mxu0 0.0
      %1502 = vmatprep.subr.mxu0 0.0
      %1503 = vmatpush2.msra.mxu0 0.0
      %1504 = vmatprep.subr.mxu0 0.0
      %1505 = vmatpush2.msra.mxu0 0.0
      %1506 = vmatprep.mubr.f32.mxu0 0.0
      %1507 = vmatmul.mubr.f32.gmra.mxu0 %v1161
      %v1508 = vpop.f32.mrf.mxu0
      %v1509 = vadd.f32 %v1148, %v1508
      %v1510 = vpop.f32.mrf.mxu0
      %v1511 = vadd.f32 %v1148, %v1510
      %1512 = vmatprep.mubr.f32.mxu0 0.0
      %1513 = vmatmul.mubr.f32.gmra.mxu0 %v1164
      %v1514 = vpop.f32.mrf.mxu0
      %v1515 = vadd.f32 %v1153, %v1514
      %v1516 = vpop.f32.mrf.mxu0
      %v1517 = vadd.f32 %v1153, %v1516
      %1518 = vmatprep.mubr.f32.mxu0 0.0
      %1519 = vmatmul.mubr.f32.gmra.mxu0 %v1167
      %v1520 = vpop.f32.mrf.mxu0
      %v1521 = vadd.f32 %v1158, %v1520
      %v1522 = vpop.f32.mrf.mxu0
      %v1523 = vadd.f32 %v1158, %v1522
      %1524 = vdwg.mxu0
      %v1525 = vtanh.pop %v1260
      %v1526 = vtanh.pop %v1262
      %v1527 = vtanh.pop %v1343
      %v1528 = vtanh.pop %v1345
      %v1529 = vtanh.pop %v1426
      %v1530 = vtanh.pop %v1428
      %v1531 = vtanh.pop %v1509
      %v1532 = vtanh.pop %v1511
      %v1533 = vtanh.pop %v1266
      %v1534 = vtanh.pop %v1268
      %v1535 = vtanh.pop %v1349
      %v1536 = vtanh.pop %v1351
      %v1537 = vtanh.pop %v1432
      %v1538 = vtanh.pop %v1434
      %v1539 = vtanh.pop %v1515
      %v1540 = vtanh.pop %v1517
      %v1541 = vtanh.pop %v1272
      %v1542 = vtanh.pop %v1274
      %v1543 = vtanh.pop %v1355
      %v1544 = vtanh.pop %v1357
      %v1545 = vtanh.pop %v1438
      %v1546 = vtanh.pop %v1440
      %v1547 = vtanh.pop %v1521
      %v1548 = vtanh.pop %v1523
      %s1549 = scalar_lea.vmem %s5, 48
      %v1550 = vld [vmem:[%s1549] sm:$0xff]
      %v1551 = vld [vmem:[%s1549 + $0x8] sm:$0xff]
      %v1552 = vld [vmem:[%s1549 + $0x10] sm:$0xf]
      %s1553 = scalar_lea.vmem %s6, 48
      %v1554 = vld [vmem:[%s1553] sm:$0xff]
      %v1555 = vld [vmem:[%s1553 + $0x8] sm:$0xff]
      %v1556 = vld [vmem:[%s1553 + $0x10] sm:$0xf]
      %1558 = vset.pattern.permute.xlu0 0
      %1559 = vperm.xlu0 %1558, %v1554
      %v1560 = vpop.permute.xlu0 %1559
      %1563 = vset.pattern.permute.xlu0 0
      %1564 = vperm.xlu0 %1563, %v1555
      %v1565 = vpop.permute.xlu0 %1564
      %1568 = vset.pattern.permute.xlu0 0
      %1569 = vperm.xlu0 %1568, %v1556
      %v1570 = vpop.permute.xlu0 %1569
      %v1573 = vsel %vm746, %v1550, 0
      %v1576 = vsel %vm746, %v1551, 0
      %v1579 = vsel %vm746, %v1552, 0
      %v1582 = vsel %vm756, %v1541, 0
      %v1585 = vsel %vm756, %v1542, 0
      %v1588 = vsel %vm756, %v1543, 0
      %v1591 = vsel %vm756, %v1544, 0
      %v1594 = vsel %vm756, %v1545, 0
      %v1597 = vsel %vm756, %v1546, 0
      %v1600 = vsel %vm756, %v1547, 0
      %v1603 = vsel %vm756, %v1548, 0
      %1605 = vmatprep.subr.mxu0 0.0
      %1606 = vmatpush1.msra.mxu0 0.0
      %1607 = vmatprep.subr.mxu0 0.0
      %1608 = vmatpush1.msra.mxu0 0.0
      %1609 = vmatprep.subr.mxu0 0.0
      %1610 = vmatpush1.msra.mxu0 0.0
      %1611 = vmatprep.subr.mxu0 0.0
      %1612 = vmatpush1.msra.mxu0 0.0
      %1613 = vmatprep.subr.mxu0 0.0
      %1614 = vmatpush1.msra.mxu0 0.0
      %1615 = vmatprep.subr.mxu0 0.0
      %1616 = vmatpush1.msra.mxu0 0.0
      %1617 = vmatprep.subr.mxu0 0.0
      %1618 = vmatpush1.msra.mxu0 0.0
      %1619 = vmatprep.subr.mxu0 0.0
      %1620 = vmatpush1.msra.mxu0 0.0
      %1621 = vmatprep.subr.mxu0 0.0
      %1622 = vmatpush1.msra.mxu0 0.0
      %1623 = vmatprep.subr.mxu0 0.0
      %1624 = vmatpush1.msra.mxu0 0.0
      %1625 = vmatprep.subr.mxu0 0.0
      %1626 = vmatpush1.msra.mxu0 0.0
      %1627 = vmatprep.subr.mxu0 0.0
      %1628 = vmatpush1.msra.mxu0 0.0
      %1629 = vmatprep.subr.mxu0 0.0
      %1630 = vmatpush1.msra.mxu0 0.0
      %1631 = vmatprep.subr.mxu0 %v1585
      %1632 = vmatpush1.msra.mxu0 %v1582
      %1633 = vmatprep.subr.mxu0 %v1534
      %1634 = vmatpush1.msra.mxu0 %v1533
      %1635 = vmatprep.subr.mxu0 %v1526
      %1636 = vmatpush1.msra.mxu0 %v1525
      %1637 = vmatprep.subr.mxu0 0.0
      %1638 = vmatpush2.msra.mxu0 0.0
      %1639 = vmatprep.subr.mxu0 0.0
      %1640 = vmatpush2.msra.mxu0 0.0
      %1641 = vmatprep.subr.mxu0 0.0
      %1642 = vmatpush2.msra.mxu0 0.0
      %1643 = vmatprep.subr.mxu0 0.0
      %1644 = vmatpush2.msra.mxu0 0.0
      %1645 = vmatprep.subr.mxu0 0.0
      %1646 = vmatpush2.msra.mxu0 0.0
      %1647 = vmatprep.subr.mxu0 0.0
      %1648 = vmatpush2.msra.mxu0 0.0
      %1649 = vmatprep.subr.mxu0 0.0
      %1650 = vmatpush2.msra.mxu0 0.0
      %1651 = vmatprep.subr.mxu0 0.0
      %1652 = vmatpush2.msra.mxu0 0.0
      %1653 = vmatprep.subr.mxu0 0.0
      %1654 = vmatpush2.msra.mxu0 0.0
      %1655 = vmatprep.subr.mxu0 0.0
      %1656 = vmatpush2.msra.mxu0 0.0
      %1657 = vmatprep.subr.mxu0 0.0
      %1658 = vmatpush2.msra.mxu0 0.0
      %1659 = vmatprep.subr.mxu0 0.0
      %1660 = vmatpush2.msra.mxu0 0.0
      %1661 = vmatprep.subr.mxu0 0.0
      %1662 = vmatpush2.msra.mxu0 0.0
      %1663 = vmatprep.subr.mxu0 0.0
      %1664 = vmatpush2.msra.mxu0 0.0
      %1665 = vmatprep.subr.mxu0 0.0
      %1666 = vmatpush2.msra.mxu0 0.0
      %1667 = vmatprep.subr.mxu0 0.0
      %1668 = vmatpush2.msra.mxu0 0.0
      %1669 = vmatprep.mubr.f32.mxu0 0.0
      %1670 = vmatmul.mubr.f32.gmra.mxu0 %v1573
      %v1671 = vpop.f32.mrf.mxu0
      %v1672 = vadd.f32 %v1560, %v1671
      %v1673 = vpop.f32.mrf.mxu0
      %v1674 = vadd.f32 %v1560, %v1673
      %1675 = vmatprep.mubr.f32.mxu0 0.0
      %1676 = vmatmul.mubr.f32.gmra.mxu0 %v1576
      %v1677 = vpop.f32.mrf.mxu0
      %v1678 = vadd.f32 %v1565, %v1677
      %v1679 = vpop.f32.mrf.mxu0
      %v1680 = vadd.f32 %v1565, %v1679
      %1681 = vmatprep.mubr.f32.mxu0 0.0
      %1682 = vmatmul.mubr.f32.gmra.mxu0 %v1579
      %v1683 = vpop.f32.mrf.mxu0
      %v1684 = vadd.f32 %v1570, %v1683
      %v1685 = vpop.f32.mrf.mxu0
      %v1686 = vadd.f32 %v1570, %v1685
      %1687 = vdwg.mxu0
      %1688 = vmatprep.subr.mxu0 0.0
      %1689 = vmatpush1.msra.mxu0 0.0
      %1690 = vmatprep.subr.mxu0 0.0
      %1691 = vmatpush1.msra.mxu0 0.0
      %1692 = vmatprep.subr.mxu0 0.0
      %1693 = vmatpush1.msra.mxu0 0.0
      %1694 = vmatprep.subr.mxu0 0.0
      %1695 = vmatpush1.msra.mxu0 0.0
      %1696 = vmatprep.subr.mxu0 0.0
      %1697 = vmatpush1.msra.mxu0 0.0
      %1698 = vmatprep.subr.mxu0 0.0
      %1699 = vmatpush1.msra.mxu0 0.0
      %1700 = vmatprep.subr.mxu0 0.0
      %1701 = vmatpush1.msra.mxu0 0.0
      %1702 = vmatprep.subr.mxu0 0.0
      %1703 = vmatpush1.msra.mxu0 0.0
      %1704 = vmatprep.subr.mxu0 0.0
      %1705 = vmatpush1.msra.mxu0 0.0
      %1706 = vmatprep.subr.mxu0 0.0
      %1707 = vmatpush1.msra.mxu0 0.0
      %1708 = vmatprep.subr.mxu0 0.0
      %1709 = vmatpush1.msra.mxu0 0.0
      %1710 = vmatprep.subr.mxu0 0.0
      %1711 = vmatpush1.msra.mxu0 0.0
      %1712 = vmatprep.subr.mxu0 0.0
      %1713 = vmatpush1.msra.mxu0 0.0
      %1714 = vmatprep.subr.mxu0 %v1591
      %1715 = vmatpush1.msra.mxu0 %v1588
      %1716 = vmatprep.subr.mxu0 %v1536
      %1717 = vmatpush1.msra.mxu0 %v1535
      %1718 = vmatprep.subr.mxu0 %v1528
      %1719 = vmatpush1.msra.mxu0 %v1527
      %1720 = vmatprep.subr.mxu0 0.0
      %1721 = vmatpush2.msra.mxu0 0.0
      %1722 = vmatprep.subr.mxu0 0.0
      %1723 = vmatpush2.msra.mxu0 0.0
      %1724 = vmatprep.subr.mxu0 0.0
      %1725 = vmatpush2.msra.mxu0 0.0
      %1726 = vmatprep.subr.mxu0 0.0
      %1727 = vmatpush2.msra.mxu0 0.0
      %1728 = vmatprep.subr.mxu0 0.0
      %1729 = vmatpush2.msra.mxu0 0.0
      %1730 = vmatprep.subr.mxu0 0.0
      %1731 = vmatpush2.msra.mxu0 0.0
      %1732 = vmatprep.subr.mxu0 0.0
      %1733 = vmatpush2.msra.mxu0 0.0
      %1734 = vmatprep.subr.mxu0 0.0
      %1735 = vmatpush2.msra.mxu0 0.0
      %1736 = vmatprep.subr.mxu0 0.0
      %1737 = vmatpush2.msra.mxu0 0.0
      %1738 = vmatprep.subr.mxu0 0.0
      %1739 = vmatpush2.msra.mxu0 0.0
      %1740 = vmatprep.subr.mxu0 0.0
      %1741 = vmatpush2.msra.mxu0 0.0
      %1742 = vmatprep.subr.mxu0 0.0
      %1743 = vmatpush2.msra.mxu0 0.0
      %1744 = vmatprep.subr.mxu0 0.0
      %1745 = vmatpush2.msra.mxu0 0.0
      %1746 = vmatprep.subr.mxu0 0.0
      %1747 = vmatpush2.msra.mxu0 0.0
      %1748 = vmatprep.subr.mxu0 0.0
      %1749 = vmatpush2.msra.mxu0 0.0
      %1750 = vmatprep.subr.mxu0 0.0
      %1751 = vmatpush2.msra.mxu0 0.0
      %1752 = vmatprep.mubr.f32.mxu0 0.0
      %1753 = vmatmul.mubr.f32.gmra.mxu0 %v1573
      %v1754 = vpop.f32.mrf.mxu0
      %v1755 = vadd.f32 %v1560, %v1754
      %v1756 = vpop.f32.mrf.mxu0
      %v1757 = vadd.f32 %v1560, %v1756
      %1758 = vmatprep.mubr.f32.mxu0 0.0
      %1759 = vmatmul.mubr.f32.gmra.mxu0 %v1576
      %v1760 = vpop.f32.mrf.mxu0
      %v1761 = vadd.f32 %v1565, %v1760
      %v1762 = vpop.f32.mrf.mxu0
      %v1763 = vadd.f32 %v1565, %v1762
      %1764 = vmatprep.mubr.f32.mxu0 0.0
      %1765 = vmatmul.mubr.f32.gmra.mxu0 %v1579
      %v1766 = vpop.f32.mrf.mxu0
      %v1767 = vadd.f32 %v1570, %v1766
      %v1768 = vpop.f32.mrf.mxu0
      %v1769 = vadd.f32 %v1570, %v1768
      %1770 = vdwg.mxu0
      %1771 = vmatprep.subr.mxu0 0.0
      %1772 = vmatpush1.msra.mxu0 0.0
      %1773 = vmatprep.subr.mxu0 0.0
      %1774 = vmatpush1.msra.mxu0 0.0
      %1775 = vmatprep.subr.mxu0 0.0
      %1776 = vmatpush1.msra.mxu0 0.0
      %1777 = vmatprep.subr.mxu0 0.0
      %1778 = vmatpush1.msra.mxu0 0.0
      %1779 = vmatprep.subr.mxu0 0.0
      %1780 = vmatpush1.msra.mxu0 0.0
      %1781 = vmatprep.subr.mxu0 0.0
      %1782 = vmatpush1.msra.mxu0 0.0
      %1783 = vmatprep.subr.mxu0 0.0
      %1784 = vmatpush1.msra.mxu0 0.0
      %1785 = vmatprep.subr.mxu0 0.0
      %1786 = vmatpush1.msra.mxu0 0.0
      %1787 = vmatprep.subr.mxu0 0.0
      %1788 = vmatpush1.msra.mxu0 0.0
      %1789 = vmatprep.subr.mxu0 0.0
      %1790 = vmatpush1.msra.mxu0 0.0
      %1791 = vmatprep.subr.mxu0 0.0
      %1792 = vmatpush1.msra.mxu0 0.0
      %1793 = vmatprep.subr.mxu0 0.0
      %1794 = vmatpush1.msra.mxu0 0.0
      %1795 = vmatprep.subr.mxu0 0.0
      %1796 = vmatpush1.msra.mxu0 0.0
      %1797 = vmatprep.subr.mxu0 %v1597
      %1798 = vmatpush1.msra.mxu0 %v1594
      %1799 = vmatprep.subr.mxu0 %v1538
      %1800 = vmatpush1.msra.mxu0 %v1537
      %1801 = vmatprep.subr.mxu0 %v1530
      %1802 = vmatpush1.msra.mxu0 %v1529
      %1803 = vmatprep.subr.mxu0 0.0
      %1804 = vmatpush2.msra.mxu0 0.0
      %1805 = vmatprep.subr.mxu0 0.0
      %1806 = vmatpush2.msra.mxu0 0.0
      %1807 = vmatprep.subr.mxu0 0.0
      %1808 = vmatpush2.msra.mxu0 0.0
      %1809 = vmatprep.subr.mxu0 0.0
      %1810 = vmatpush2.msra.mxu0 0.0
      %1811 = vmatprep.subr.mxu0 0.0
      %1812 = vmatpush2.msra.mxu0 0.0
      %1813 = vmatprep.subr.mxu0 0.0
      %1814 = vmatpush2.msra.mxu0 0.0
      %1815 = vmatprep.subr.mxu0 0.0
      %1816 = vmatpush2.msra.mxu0 0.0
      %1817 = vmatprep.subr.mxu0 0.0
      %1818 = vmatpush2.msra.mxu0 0.0
      %1819 = vmatprep.subr.mxu0 0.0
      %1820 = vmatpush2.msra.mxu0 0.0
      %1821 = vmatprep.subr.mxu0 0.0
      %1822 = vmatpush2.msra.mxu0 0.0
      %1823 = vmatprep.subr.mxu0 0.0
      %1824 = vmatpush2.msra.mxu0 0.0
      %1825 = vmatprep.subr.mxu0 0.0
      %1826 = vmatpush2.msra.mxu0 0.0
      %1827 = vmatprep.subr.mxu0 0.0
      %1828 = vmatpush2.msra.mxu0 0.0
      %1829 = vmatprep.subr.mxu0 0.0
      %1830 = vmatpush2.msra.mxu0 0.0
      %1831 = vmatprep.subr.mxu0 0.0
      %1832 = vmatpush2.msra.mxu0 0.0
      %1833 = vmatprep.subr.mxu0 0.0
      %1834 = vmatpush2.msra.mxu0 0.0
      %1835 = vmatprep.mubr.f32.mxu0 0.0
      %1836 = vmatmul.mubr.f32.gmra.mxu0 %v1573
      %v1837 = vpop.f32.mrf.mxu0
      %v1838 = vadd.f32 %v1560, %v1837
      %v1839 = vpop.f32.mrf.mxu0
      %v1840 = vadd.f32 %v1560, %v1839
      %1841 = vmatprep.mubr.f32.mxu0 0.0
      %1842 = vmatmul.mubr.f32.gmra.mxu0 %v1576
      %v1843 = vpop.f32.mrf.mxu0
      %v1844 = vadd.f32 %v1565, %v1843
      %v1845 = vpop.f32.mrf.mxu0
      %v1846 = vadd.f32 %v1565, %v1845
      %1847 = vmatprep.mubr.f32.mxu0 0.0
      %1848 = vmatmul.mubr.f32.gmra.mxu0 %v1579
      %v1849 = vpop.f32.mrf.mxu0
      %v1850 = vadd.f32 %v1570, %v1849
      %v1851 = vpop.f32.mrf.mxu0
      %v1852 = vadd.f32 %v1570, %v1851
      %1853 = vdwg.mxu0
      %1854 = vmatprep.subr.mxu0 0.0
      %1855 = vmatpush1.msra.mxu0 0.0
      %1856 = vmatprep.subr.mxu0 0.0
      %1857 = vmatpush1.msra.mxu0 0.0
      %1858 = vmatprep.subr.mxu0 0.0
      %1859 = vmatpush1.msra.mxu0 0.0
      %1860 = vmatprep.subr.mxu0 0.0
      %1861 = vmatpush1.msra.mxu0 0.0
      %1862 = vmatprep.subr.mxu0 0.0
      %1863 = vmatpush1.msra.mxu0 0.0
      %1864 = vmatprep.subr.mxu0 0.0
      %1865 = vmatpush1.msra.mxu0 0.0
      %1866 = vmatprep.subr.mxu0 0.0
      %1867 = vmatpush1.msra.mxu0 0.0
      %1868 = vmatprep.subr.mxu0 0.0
      %1869 = vmatpush1.msra.mxu0 0.0
      %1870 = vmatprep.subr.mxu0 0.0
      %1871 = vmatpush1.msra.mxu0 0.0
      %1872 = vmatprep.subr.mxu0 0.0
      %1873 = vmatpush1.msra.mxu0 0.0
      %1874 = vmatprep.subr.mxu0 0.0
      %1875 = vmatpush1.msra.mxu0 0.0
      %1876 = vmatprep.subr.mxu0 0.0
      %1877 = vmatpush1.msra.mxu0 0.0
      %1878 = vmatprep.subr.mxu0 0.0
      %1879 = vmatpush1.msra.mxu0 0.0
      %1880 = vmatprep.subr.mxu0 %v1603
      %1881 = vmatpush1.msra.mxu0 %v1600
      %1882 = vmatprep.subr.mxu0 %v1540
      %1883 = vmatpush1.msra.mxu0 %v1539
      %1884 = vmatprep.subr.mxu0 %v1532
      %1885 = vmatpush1.msra.mxu0 %v1531
      %1886 = vmatprep.subr.mxu0 0.0
      %1887 = vmatpush2.msra.mxu0 0.0
      %1888 = vmatprep.subr.mxu0 0.0
      %1889 = vmatpush2.msra.mxu0 0.0
      %1890 = vmatprep.subr.mxu0 0.0
      %1891 = vmatpush2.msra.mxu0 0.0
      %1892 = vmatprep.subr.mxu0 0.0
      %1893 = vmatpush2.msra.mxu0 0.0
      %1894 = vmatprep.subr.mxu0 0.0
      %1895 = vmatpush2.msra.mxu0 0.0
      %1896 = vmatprep.subr.mxu0 0.0
      %1897 = vmatpush2.msra.mxu0 0.0
      %1898 = vmatprep.subr.mxu0 0.0
      %1899 = vmatpush2.msra.mxu0 0.0
      %1900 = vmatprep.subr.mxu0 0.0
      %1901 = vmatpush2.msra.mxu0 0.0
      %1902 = vmatprep.subr.mxu0 0.0
      %1903 = vmatpush2.msra.mxu0 0.0
      %1904 = vmatprep.subr.mxu0 0.0
      %1905 = vmatpush2.msra.mxu0 0.0
      %1906 = vmatprep.subr.mxu0 0.0
      %1907 = vmatpush2.msra.mxu0 0.0
      %1908 = vmatprep.subr.mxu0 0.0
      %1909 = vmatpush2.msra.mxu0 0.0
      %1910 = vmatprep.subr.mxu0 0.0
      %1911 = vmatpush2.msra.mxu0 0.0
      %1912 = vmatprep.subr.mxu0 0.0
      %1913 = vmatpush2.msra.mxu0 0.0
      %1914 = vmatprep.subr.mxu0 0.0
      %1915 = vmatpush2.msra.mxu0 0.0
      %1916 = vmatprep.subr.mxu0 0.0
      %1917 = vmatpush2.msra.mxu0 0.0
      %1918 = vmatprep.mubr.f32.mxu0 0.0
      %1919 = vmatmul.mubr.f32.gmra.mxu0 %v1573
      %v1920 = vpop.f32.mrf.mxu0
      %v1921 = vadd.f32 %v1560, %v1920
      %v1922 = vpop.f32.mrf.mxu0
      %v1923 = vadd.f32 %v1560, %v1922
      %1924 = vmatprep.mubr.f32.mxu0 0.0
      %1925 = vmatmul.mubr.f32.gmra.mxu0 %v1576
      %v1926 = vpop.f32.mrf.mxu0
      %v1927 = vadd.f32 %v1565, %v1926
      %v1928 = vpop.f32.mrf.mxu0
      %v1929 = vadd.f32 %v1565, %v1928
      %1930 = vmatprep.mubr.f32.mxu0 0.0
      %1931 = vmatmul.mubr.f32.gmra.mxu0 %v1579
      %v1932 = vpop.f32.mrf.mxu0
      %v1933 = vadd.f32 %v1570, %v1932
      %v1934 = vpop.f32.mrf.mxu0
      %v1935 = vadd.f32 %v1570, %v1934
      %1936 = vdwg.mxu0
      %v1937 = vtanh.pop %v1672
      %v1938 = vtanh.pop %v1674
      %v1939 = vtanh.pop %v1755
      %v1940 = vtanh.pop %v1757
      %v1941 = vtanh.pop %v1838
      %v1942 = vtanh.pop %v1840
      %v1943 = vtanh.pop %v1921
      %v1944 = vtanh.pop %v1923
      %v1945 = vtanh.pop %v1678
      %v1946 = vtanh.pop %v1680
      %v1947 = vtanh.pop %v1761
      %v1948 = vtanh.pop %v1763
      %v1949 = vtanh.pop %v1844
      %v1950 = vtanh.pop %v1846
      %v1951 = vtanh.pop %v1927
      %v1952 = vtanh.pop %v1929
      %v1953 = vtanh.pop %v1684
      %v1954 = vtanh.pop %v1686
      %v1955 = vtanh.pop %v1767
      %v1956 = vtanh.pop %v1769
      %v1957 = vtanh.pop %v1850
      %v1958 = vtanh.pop %v1852
      %v1959 = vtanh.pop %v1933
      %v1960 = vtanh.pop %v1935
      %v1961 = vld [vmem:[%s7] sm:$0x1]
      %v1962 = vld [vmem:[#allocation2] sm:$0x1]
      %1964 = vset.pattern.permute.xlu0 0
      %1965 = vperm.xlu0 %1964, %v1962
      %v1966 = vpop.permute.xlu0 %1965
      %v1968 = vlaneseq
      %v1969 = vshrl.u32 %v1968, 7
      %v1970 = vsub.s32 0, %v1969
      %v1971 = vrot.slane %v1966, %v1970
      %v1973 = vsel %vm746, %v1961, 0
      %v1976 = vsel %vm756, %v1953, 0
      %v1979 = vsel %vm756, %v1954, 0
      %v1982 = vsel %vm756, %v1955, 0
      %v1985 = vsel %vm756, %v1956, 0
      %v1988 = vsel %vm756, %v1957, 0
      %v1991 = vsel %vm756, %v1958, 0
      %v1994 = vsel %vm756, %v1959, 0
      %v1997 = vsel %vm756, %v1960, 0
      %1999 = vmatprep.subr.mxu0 0.0
      %2000 = vmatpush1.msra.mxu0 0.0
      %2001 = vmatprep.subr.mxu0 0.0
      %2002 = vmatpush1.msra.mxu0 0.0
      %2003 = vmatprep.subr.mxu0 0.0
      %2004 = vmatpush1.msra.mxu0 0.0
      %2005 = vmatprep.subr.mxu0 0.0
      %2006 = vmatpush1.msra.mxu0 0.0
      %2007 = vmatprep.subr.mxu0 0.0
      %2008 = vmatpush1.msra.mxu0 0.0
      %2009 = vmatprep.subr.mxu0 0.0
      %2010 = vmatpush1.msra.mxu0 0.0
      %2011 = vmatprep.subr.mxu0 0.0
      %2012 = vmatpush1.msra.mxu0 0.0
      %2013 = vmatprep.subr.mxu0 0.0
      %2014 = vmatpush1.msra.mxu0 0.0
      %2015 = vmatprep.subr.mxu0 0.0
      %2016 = vmatpush1.msra.mxu0 0.0
      %2017 = vmatprep.subr.mxu0 0.0
      %2018 = vmatpush1.msra.mxu0 0.0
      %2019 = vmatprep.subr.mxu0 0.0
      %2020 = vmatpush1.msra.mxu0 0.0
      %2021 = vmatprep.subr.mxu0 0.0
      %2022 = vmatpush1.msra.mxu0 0.0
      %2023 = vmatprep.subr.mxu0 0.0
      %2024 = vmatpush1.msra.mxu0 0.0
      %2025 = vmatprep.subr.mxu0 %v1979
      %2026 = vmatpush1.msra.mxu0 %v1976
      %2027 = vmatprep.subr.mxu0 %v1946
      %2028 = vmatpush1.msra.mxu0 %v1945
      %2029 = vmatprep.subr.mxu0 %v1938
      %2030 = vmatpush1.msra.mxu0 %v1937
      %2031 = vmatprep.subr.mxu0 0.0
      %2032 = vmatpush2.msra.mxu0 0.0
      %2033 = vmatprep.subr.mxu0 0.0
      %2034 = vmatpush2.msra.mxu0 0.0
      %2035 = vmatprep.subr.mxu0 0.0
      %2036 = vmatpush2.msra.mxu0 0.0
      %2037 = vmatprep.subr.mxu0 0.0
      %2038 = vmatpush2.msra.mxu0 0.0
      %2039 = vmatprep.subr.mxu0 0.0
      %2040 = vmatpush2.msra.mxu0 0.0
      %2041 = vmatprep.subr.mxu0 0.0
      %2042 = vmatpush2.msra.mxu0 0.0
      %2043 = vmatprep.subr.mxu0 0.0
      %2044 = vmatpush2.msra.mxu0 0.0
      %2045 = vmatprep.subr.mxu0 0.0
      %2046 = vmatpush2.msra.mxu0 0.0
      %2047 = vmatprep.subr.mxu0 0.0
      %2048 = vmatpush2.msra.mxu0 0.0
      %2049 = vmatprep.subr.mxu0 0.0
      %2050 = vmatpush2.msra.mxu0 0.0
      %2051 = vmatprep.subr.mxu0 0.0
      %2052 = vmatpush2.msra.mxu0 0.0
      %2053 = vmatprep.subr.mxu0 0.0
      %2054 = vmatpush2.msra.mxu0 0.0
      %2055 = vmatprep.subr.mxu0 0.0
      %2056 = vmatpush2.msra.mxu0 0.0
      %2057 = vmatprep.subr.mxu0 0.0
      %2058 = vmatpush2.msra.mxu0 0.0
      %2059 = vmatprep.subr.mxu0 0.0
      %2060 = vmatpush2.msra.mxu0 0.0
      %2061 = vmatprep.subr.mxu0 0.0
      %2062 = vmatpush2.msra.mxu0 0.0
      %2063 = vmatprep.mubr.f32.mxu0 0.0
      %2064 = vmatmul.mubr.f32.gmra.mxu0 %v1973
      %v2065 = vpop.f32.mrf.mxu0
      %v2066 = vadd.f32 %v1971, %v2065
      %v2067 = vpop.f32.mrf.mxu0
      %v2068 = vadd.f32 %v1971, %v2067
      %2069 = vdwg.mxu0
      %2070 = vmatprep.subr.mxu0 0.0
      %2071 = vmatpush1.msra.mxu0 0.0
      %2072 = vmatprep.subr.mxu0 0.0
      %2073 = vmatpush1.msra.mxu0 0.0
      %2074 = vmatprep.subr.mxu0 0.0
      %2075 = vmatpush1.msra.mxu0 0.0
      %2076 = vmatprep.subr.mxu0 0.0
      %2077 = vmatpush1.msra.mxu0 0.0
      %2078 = vmatprep.subr.mxu0 0.0
      %2079 = vmatpush1.msra.mxu0 0.0
      %2080 = vmatprep.subr.mxu0 0.0
      %2081 = vmatpush1.msra.mxu0 0.0
      %2082 = vmatprep.subr.mxu0 0.0
      %2083 = vmatpush1.msra.mxu0 0.0
      %2084 = vmatprep.subr.mxu0 0.0
      %2085 = vmatpush1.msra.mxu0 0.0
      %2086 = vmatprep.subr.mxu0 0.0
      %2087 = vmatpush1.msra.mxu0 0.0
      %2088 = vmatprep.subr.mxu0 0.0
      %2089 = vmatpush1.msra.mxu0 0.0
      %2090 = vmatprep.subr.mxu0 0.0
      %2091 = vmatpush1.msra.mxu0 0.0
      %2092 = vmatprep.subr.mxu0 0.0
      %2093 = vmatpush1.msra.mxu0 0.0
      %2094 = vmatprep.subr.mxu0 0.0
      %2095 = vmatpush1.msra.mxu0 0.0
      %2096 = vmatprep.subr.mxu0 %v1985
      %2097 = vmatpush1.msra.mxu0 %v1982
      %2098 = vmatprep.subr.mxu0 %v1948
      %2099 = vmatpush1.msra.mxu0 %v1947
      %2100 = vmatprep.subr.mxu0 %v1940
      %2101 = vmatpush1.msra.mxu0 %v1939
      %2102 = vmatprep.subr.mxu0 0.0
      %2103 = vmatpush2.msra.mxu0 0.0
      %2104 = vmatprep.subr.mxu0 0.0
      %2105 = vmatpush2.msra.mxu0 0.0
      %2106 = vmatprep.subr.mxu0 0.0
      %2107 = vmatpush2.msra.mxu0 0.0
      %2108 = vmatprep.subr.mxu0 0.0
      %2109 = vmatpush2.msra.mxu0 0.0
      %2110 = vmatprep.subr.mxu0 0.0
      %2111 = vmatpush2.msra.mxu0 0.0
      %2112 = vmatprep.subr.mxu0 0.0
      %2113 = vmatpush2.msra.mxu0 0.0
      %2114 = vmatprep.subr.mxu0 0.0
      %2115 = vmatpush2.msra.mxu0 0.0
      %2116 = vmatprep.subr.mxu0 0.0
      %2117 = vmatpush2.msra.mxu0 0.0
      %2118 = vmatprep.subr.mxu0 0.0
      %2119 = vmatpush2.msra.mxu0 0.0
      %2120 = vmatprep.subr.mxu0 0.0
      %2121 = vmatpush2.msra.mxu0 0.0
      %2122 = vmatprep.subr.mxu0 0.0
      %2123 = vmatpush2.msra.mxu0 0.0
      %2124 = vmatprep.subr.mxu0 0.0
      %2125 = vmatpush2.msra.mxu0 0.0
      %2126 = vmatprep.subr.mxu0 0.0
      %2127 = vmatpush2.msra.mxu0 0.0
      %2128 = vmatprep.subr.mxu0 0.0
      %2129 = vmatpush2.msra.mxu0 0.0
      %2130 = vmatprep.subr.mxu0 0.0
      %2131 = vmatpush2.msra.mxu0 0.0
      %2132 = vmatprep.subr.mxu0 0.0
      %2133 = vmatpush2.msra.mxu0 0.0
      %2134 = vmatprep.mubr.f32.mxu0 0.0
      %2135 = vmatmul.mubr.f32.gmra.mxu0 %v1973
      %v2136 = vpop.f32.mrf.mxu0
      %v2137 = vadd.f32 %v1971, %v2136
      %v2138 = vpop.f32.mrf.mxu0
      %v2139 = vadd.f32 %v1971, %v2138
      %2140 = vdwg.mxu0
      %2141 = vmatprep.subr.mxu0 0.0
      %2142 = vmatpush1.msra.mxu0 0.0
      %2143 = vmatprep.subr.mxu0 0.0
      %2144 = vmatpush1.msra.mxu0 0.0
      %2145 = vmatprep.subr.mxu0 0.0
      %2146 = vmatpush1.msra.mxu0 0.0
      %2147 = vmatprep.subr.mxu0 0.0
      %2148 = vmatpush1.msra.mxu0 0.0
      %2149 = vmatprep.subr.mxu0 0.0
      %2150 = vmatpush1.msra.mxu0 0.0
      %2151 = vmatprep.subr.mxu0 0.0
      %2152 = vmatpush1.msra.mxu0 0.0
      %2153 = vmatprep.subr.mxu0 0.0
      %2154 = vmatpush1.msra.mxu0 0.0
      %2155 = vmatprep.subr.mxu0 0.0
      %2156 = vmatpush1.msra.mxu0 0.0
      %2157 = vmatprep.subr.mxu0 0.0
      %2158 = vmatpush1.msra.mxu0 0.0
      %2159 = vmatprep.subr.mxu0 0.0
      %2160 = vmatpush1.msra.mxu0 0.0
      %2161 = vmatprep.subr.mxu0 0.0
      %2162 = vmatpush1.msra.mxu0 0.0
      %2163 = vmatprep.subr.mxu0 0.0
      %2164 = vmatpush1.msra.mxu0 0.0
      %2165 = vmatprep.subr.mxu0 0.0
      %2166 = vmatpush1.msra.mxu0 0.0
      %2167 = vmatprep.subr.mxu0 %v1991
      %2168 = vmatpush1.msra.mxu0 %v1988
      %2169 = vmatprep.subr.mxu0 %v1950
      %2170 = vmatpush1.msra.mxu0 %v1949
      %2171 = vmatprep.subr.mxu0 %v1942
      %2172 = vmatpush1.msra.mxu0 %v1941
      %2173 = vmatprep.subr.mxu0 0.0
      %2174 = vmatpush2.msra.mxu0 0.0
      %2175 = vmatprep.subr.mxu0 0.0
      %2176 = vmatpush2.msra.mxu0 0.0
      %2177 = vmatprep.subr.mxu0 0.0
      %2178 = vmatpush2.msra.mxu0 0.0
      %2179 = vmatprep.subr.mxu0 0.0
      %2180 = vmatpush2.msra.mxu0 0.0
      %2181 = vmatprep.subr.mxu0 0.0
      %2182 = vmatpush2.msra.mxu0 0.0
      %2183 = vmatprep.subr.mxu0 0.0
      %2184 = vmatpush2.msra.mxu0 0.0
      %2185 = vmatprep.subr.mxu0 0.0
      %2186 = vmatpush2.msra.mxu0 0.0
      %2187 = vmatprep.subr.mxu0 0.0
      %2188 = vmatpush2.msra.mxu0 0.0
      %2189 = vmatprep.subr.mxu0 0.0
      %2190 = vmatpush2.msra.mxu0 0.0
      %2191 = vmatprep.subr.mxu0 0.0
      %2192 = vmatpush2.msra.mxu0 0.0
      %2193 = vmatprep.subr.mxu0 0.0
      %2194 = vmatpush2.msra.mxu0 0.0
      %2195 = vmatprep.subr.mxu0 0.0
      %2196 = vmatpush2.msra.mxu0 0.0
      %2197 = vmatprep.subr.mxu0 0.0
      %2198 = vmatpush2.msra.mxu0 0.0
      %2199 = vmatprep.subr.mxu0 0.0
      %2200 = vmatpush2.msra.mxu0 0.0
      %2201 = vmatprep.subr.mxu0 0.0
      %2202 = vmatpush2.msra.mxu0 0.0
      %2203 = vmatprep.subr.mxu0 0.0
      %2204 = vmatpush2.msra.mxu0 0.0
      %2205 = vmatprep.mubr.f32.mxu0 0.0
      %2206 = vmatmul.mubr.f32.gmra.mxu0 %v1973
      %v2207 = vpop.f32.mrf.mxu0
      %v2208 = vadd.f32 %v1971, %v2207
      %v2209 = vpop.f32.mrf.mxu0
      %v2210 = vadd.f32 %v1971, %v2209
      %2211 = vdwg.mxu0
      %2212 = vmatprep.subr.mxu0 0.0
      %2213 = vmatpush1.msra.mxu0 0.0
      %2214 = vmatprep.subr.mxu0 0.0
      %2215 = vmatpush1.msra.mxu0 0.0
      %2216 = vmatprep.subr.mxu0 0.0
      %2217 = vmatpush1.msra.mxu0 0.0
      %2218 = vmatprep.subr.mxu0 0.0
      %2219 = vmatpush1.msra.mxu0 0.0
      %2220 = vmatprep.subr.mxu0 0.0
      %2221 = vmatpush1.msra.mxu0 0.0
      %2222 = vmatprep.subr.mxu0 0.0
      %2223 = vmatpush1.msra.mxu0 0.0
      %2224 = vmatprep.subr.mxu0 0.0
      %2225 = vmatpush1.msra.mxu0 0.0
      %2226 = vmatprep.subr.mxu0 0.0
      %2227 = vmatpush1.msra.mxu0 0.0
      %2228 = vmatprep.subr.mxu0 0.0
      %2229 = vmatpush1.msra.mxu0 0.0
      %2230 = vmatprep.subr.mxu0 0.0
      %2231 = vmatpush1.msra.mxu0 0.0
      %2232 = vmatprep.subr.mxu0 0.0
      %2233 = vmatpush1.msra.mxu0 0.0
      %2234 = vmatprep.subr.mxu0 0.0
      %2235 = vmatpush1.msra.mxu0 0.0
      %2236 = vmatprep.subr.mxu0 0.0
      %2237 = vmatpush1.msra.mxu0 0.0
      %2238 = vmatprep.subr.mxu0 %v1997
      %2239 = vmatpush1.msra.mxu0 %v1994
      %2240 = vmatprep.subr.mxu0 %v1952
      %2241 = vmatpush1.msra.mxu0 %v1951
      %2242 = vmatprep.subr.mxu0 %v1944
      %2243 = vmatpush1.msra.mxu0 %v1943
      %2244 = vmatprep.subr.mxu0 0.0
      %2245 = vmatpush2.msra.mxu0 0.0
      %2246 = vmatprep.subr.mxu0 0.0
      %2247 = vmatpush2.msra.mxu0 0.0
      %2248 = vmatprep.subr.mxu0 0.0
      %2249 = vmatpush2.msra.mxu0 0.0
      %2250 = vmatprep.subr.mxu0 0.0
      %2251 = vmatpush2.msra.mxu0 0.0
      %2252 = vmatprep.subr.mxu0 0.0
      %2253 = vmatpush2.msra.mxu0 0.0
      %2254 = vmatprep.subr.mxu0 0.0
      %2255 = vmatpush2.msra.mxu0 0.0
      %2256 = vmatprep.subr.mxu0 0.0
      %2257 = vmatpush2.msra.mxu0 0.0
      %2258 = vmatprep.subr.mxu0 0.0
      %2259 = vmatpush2.msra.mxu0 0.0
      %2260 = vmatprep.subr.mxu0 0.0
      %2261 = vmatpush2.msra.mxu0 0.0
      %2262 = vmatprep.subr.mxu0 0.0
      %2263 = vmatpush2.msra.mxu0 0.0
      %2264 = vmatprep.subr.mxu0 0.0
      %2265 = vmatpush2.msra.mxu0 0.0
      %2266 = vmatprep.subr.mxu0 0.0
      %2267 = vmatpush2.msra.mxu0 0.0
      %2268 = vmatprep.subr.mxu0 0.0
      %2269 = vmatpush2.msra.mxu0 0.0
      %2270 = vmatprep.subr.mxu0 0.0
      %2271 = vmatpush2.msra.mxu0 0.0
      %2272 = vmatprep.subr.mxu0 0.0
      %2273 = vmatpush2.msra.mxu0 0.0
      %2274 = vmatprep.subr.mxu0 0.0
      %2275 = vmatpush2.msra.mxu0 0.0
      %2276 = vmatprep.mubr.f32.mxu0 0.0
      %2277 = vmatmul.mubr.f32.gmra.mxu0 %v1973
      %v2278 = vpop.f32.mrf.mxu0
      %v2279 = vadd.f32 %v1971, %v2278
      %v2280 = vpop.f32.mrf.mxu0
      %v2281 = vadd.f32 %v1971, %v2280
      %2282 = vdwg.mxu0
      %v2291 = vcombine.low %v2066, %v2068
      %v2292 = vcombine.low %v2137, %v2139
      %v2293 = vcombine.low %v2208, %v2210
      %v2294 = vcombine.low %v2279, %v2281
      %v2296 = vunpack.c.l.s4 1966171168
      %v2297 = vunpack.c.0.s8 %v2296
      %v2298 = vlaneseq
      %v2299 = vshrl.u32 %v2298, 7
      %v2300 = vsub.s32 %v2297, %v2299
      %v2301 = vrot.slane %v2291, %v2300
      %v2303 = vunpack.c.l.s4 1966171168
      %v2304 = vunpack.c.0.s8 %v2303
      %v2305 = vlaneseq
      %v2306 = vshrl.u32 %v2305, 7
      %v2307 = vsub.s32 %v2304, %v2306
      %v2308 = vrot.slane %v2292, %v2307
      %v2310 = vunpack.c.l.s4 1966171168
      %v2311 = vunpack.c.0.s8 %v2310
      %v2312 = vlaneseq
      %v2313 = vshrl.u32 %v2312, 7
      %v2314 = vsub.s32 %v2311, %v2313
      %v2315 = vrot.slane %v2293, %v2314
      %v2317 = vunpack.c.l.s4 1966171168
      %v2318 = vunpack.c.0.s8 %v2317
      %v2319 = vlaneseq
      %v2320 = vshrl.u32 %v2319, 7
      %v2321 = vsub.s32 %v2318, %v2320
      %v2322 = vrot.slane %v2294, %v2321
      %v2323 = vcombine.low %v2301, %v2308
      %v2324 = vcombine.low %v2315, %v2322
      %v2326 = vunpack.c.l.s4 1966171168
      %v2327 = vunpack.c.0.s8 %v2326
      %v2328 = vlaneseq
      %v2329 = vshrl.u32 %v2328, 7
      %v2330 = vsub.s32 %v2327, %v2329
      %v2331 = vrot.slane %v2323, %v2330
      %v2333 = vunpack.c.l.s4 1966171168
      %v2334 = vunpack.c.0.s8 %v2333
      %v2335 = vlaneseq
      %v2336 = vshrl.u32 %v2335, 7
      %v2337 = vsub.s32 %v2334, %v2336
      %v2338 = vrot.slane %v2324, %v2337
      %v2339 = vcombine.low %v2331, %v2338
      %2341 = vst [vmem:[%s369] sm:$0xff] %v2339
      %s2342 = smul.u32 8, %s22
      %p2343 = scmp.lt.s32.totalorder %s2342, 31
      %s2344 = scalar_select %p2343, %s2342, 31
      %s2345 = scalar_lea.vmem %s9, %s2344
      // Predicated region
      $region57: #{convection_forward.1} parent=55 // pred_check
        %p2346 = pneg %p244
      $region58: #{convection_forward.1} parent=55 // pred_check_branch
        %2348 = sbr.rel (%p2346) target = $region60
      $region59: #{convection_forward.1} parent=55 // pred_region
        %s2349 = smul.u32 8, %s22
      $region60: #{convection_forward.1} parent=55 // pred_fallthru
        _
    $region56: #{convection_forward.1} parent=5 // pred_fallthru
      _
    %p2350 = scmp.le.s32.totalorder 2, %s17
    // Predicated region
    $region61: #{convection_forward.1} parent=5 // pred_check
      %p2351 = pneg %p2350
    $region62: #{convection_forward.1} parent=5 // pred_check_branch
      %2353 = sbr.rel (%p2351) target = $region64
    $region63: #{convection_forward.1} parent=5 // pred_region
      %s2354 = ssub.s32 %s17, 2
      // Predicated region
      $region65: #{convection_forward.1} parent=63 // pred_check
        %p2355 = pneg %p250
      $region66: #{convection_forward.1} parent=63 // pred_check_branch
        %2357 = sbr.rel (%p2355) target = $region68
      $region67: #{convection_forward.1} parent=63 // pred_region
        %s2358 = smul.u32 8, %s23
        %p2359 = scmp.lt.s32.totalorder %s2358, 31
        %s2360 = scalar_select %p2359, %s2358, 31
        %s2361 = scalar_lea.vmem %s9, %s2360
      $region68: #{convection_forward.1} parent=63 // pred_fallthru
        _
    $region64: #{convection_forward.1} parent=5 // pred_fallthru
      _
  $region6: #{convection_forward.1} parent=0 // loop_footer
    %s21 = sadd.s32 1, %s17
  $region7: #{convection_forward.1} parent=0 // loop_footer_branch
    %16 = sbr.rel target = $region3
  $region8: #{convection_forward.1} parent=0 // loop_exit
    _

</llo_original>
